<compile_context>
chip_gen: v6e
topology: v6e:2x2x1
jax: 0.10.0
libtpu: 0.0.40
codegen_flags: <defaults>
</compile_context>

<pallas_src>
import functools

import jax
import jax.numpy as jnp
from jax.experimental import pallas as pl
from jax.experimental.pallas import tpu as pltpu


# ----------------------------- network definition -----------------------------
INPUT_NEURON_IDS = [-1, -2, -3, -4]          # CPPN coordinate inputs (x, y, d, bias)
OUTPUT_NEURON_IDS = [0, 1, 2]                # output node keys == their indices
HIDDEN_NEURON_IDS = [3, 4, 5, 6, 7]          # node 7 has NO incoming connections

N_INPUTS = len(INPUT_NEURON_IDS)
N_OUTPUTS = len(OUTPUT_NEURON_IDS)
N_HIDDEN = len(HIDDEN_NEURON_IDS)
N_NODES = N_OUTPUTS + N_HIDDEN
N_PASSES = 3

_ROW_BIAS = N_INPUTS + N_NODES               # row index of folded bias in packed params


def build_parameters():
    """Deterministically build connections / biases / responses, mirroring the
    module's ParameterDicts, then densify into W_in[from_input, to_node],
    W_rec[from_node, to_node], bias, response, mask."""
    input_key2idx = {k: i for i, k in enumerate(INPUT_NEURON_IDS)}
    neuron_key2idx = {k: i for i, k in enumerate(OUTPUT_NEURON_IDS + HIDDEN_NEURON_IDS)}

    key = jax.random.PRNGKey(42)

    conn_keys = []
    for to_k in HIDDEN_NEURON_IDS[:-1]:          # hidden 3..6 fed by all inputs
        for from_k in INPUT_NEURON_IDS:
            conn_keys.append((from_k, to_k))
    for to_k in OUTPUT_NEURON_IDS:               # outputs fed by hidden 3..6
        for from_k in HIDDEN_NEURON_IDS[:-1]:
            conn_keys.append((from_k, to_k))
    for to_k in HIDDEN_NEURON_IDS[:-1]:          # recurrent: outputs -> hidden
        for from_k in OUTPUT_NEURON_IDS:
            conn_keys.append((from_k, to_k))
    # node 7 (last hidden) intentionally has no incoming connections -> masked

    key, k_w, k_b, k_r = jax.random.split(key, 4)
    weights = jax.random.normal(k_w, (len(conn_keys),), dtype=jnp.float32) * 0.5
    connections = {ck: weights[i] for i, ck in enumerate(conn_keys)}

    biases_vec = jax.random.normal(k_b, (N_NODES,), dtype=jnp.float32) * 0.1
    responses_vec = 1.0 + jax.random.normal(k_r, (N_NODES,), dtype=jnp.float32) * 0.05

    w_in = jnp.zeros((N_INPUTS, N_NODES), dtype=jnp.float32)
    w_rec = jnp.zeros((N_NODES, N_NODES), dtype=jnp.float32)
    mask = jnp.zeros((N_NODES,), dtype=jnp.float32)
    for (from_k, to_k), w in connections.items():
        j = neuron_key2idx[to_k]
        if from_k < 0:
            w_in = w_in.at[input_key2idx[from_k], j].set(w)
        else:
            w_rec = w_rec.at[neuron_key2idx[from_k], j].set(w)
        mask = mask.at[j].set(1.0)

    return (w_in, w_rec,
            biases_vec.reshape(1, N_NODES),
            responses_vec.reshape(1, N_NODES),
            mask.reshape(1, N_NODES))


# --------------------------------- kernel -------------------------------------
def rnn_agg_kernel(xt_ref, params_ref, out_ref, base_ref, ha_ref, hb_ref, *,
                   n_passes):
    """Transposed layout kernel.

    xt_ref:     (N_INPUTS, TILE_B)  VMEM   — inputs, batch on lanes
    params_ref: (N_INPUTS+N_NODES+1, N_NODES) SMEM — [W_in'; W_rec'; bias']
                (response folded into weight columns, mask folded into bias)
    out_ref:    (N_OUTPUTS, TILE_B) VMEM   — lane-dense output
    base_ref:   (N_NODES, TILE_B)   VMEM scratch — bias' + W_in'^T x (pass-invariant)
    ha_ref/hb_ref: (N_NODES, TILE_B) VMEM scratch — double-buffered node state
    """
    assert n_passes >= 1

    # ---- pass 0: h_prev = 0  =>  h = tanh(base) ----
    n_rows0 = N_NODES if n_passes > 1 else N_OUTPUTS
    for j in range(n_rows0):
        acc = params_ref[0, j] * xt_ref[0:1, :]
        for i in range(1, N_INPUTS):
            acc = acc + params_ref[i, j] * xt_ref[i:i + 1, :]
        acc = acc + params_ref[_ROW_BIAS, j]          # scalar splat-add (bias')
        if n_passes > 1:
            base_ref[j:j + 1, :] = acc                # reused by later passes
            ha_ref[j:j + 1, :] = jnp.tanh(acc)
        else:
            out_ref[j:j + 1, :] = jnp.tanh(acc)

    # ---- passes 1 .. n_passes-1: synchronous update, double-buffered ----
    bufs = (ha_ref, hb_ref)
    for p in range(1, n_passes):
        src = bufs[(p - 1) % 2]
        last = (p == n_passes - 1)
        dst = out_ref if last else bufs[p % 2]
        n_rows = N_OUTPUTS if last else N_NODES       # final pass: outputs only
        for j in range(n_rows):
            acc = base_ref[j:j + 1, :]
            for k in range(N_NODES):
                acc = acc + params_ref[N_INPUTS + k, j] * src[k:k + 1, :]
            dst[j:j + 1, :] = jnp.tanh(acc)


def _choose_tile(batch):
    # Prefer large lane tiles, but keep >= 2 grid steps when the batch allows
    # (so both v7x TensorCores get work); v5e/v6e just see a short serial grid.
    for t in (512, 256, 128):
        if batch >= 2 * t:
            return t
    return 128


def rnn_agg_activate(inputs, w_in, w_rec, bias, resp, mask, *, n_passes=N_PASSES):
    """inputs: (..., n_inputs) float32 -> returns (..., n_outputs)."""
    input_size = inputs.shape[:-1]
    assert inputs.shape[-1] == N_INPUTS
    x = inputs.reshape(-1, N_INPUTS).astype(jnp.float32)
    batch = x.shape[0]

    # Fold response into weight columns and mask into bias (exact: masked nodes
    # have all-zero incoming columns, so tanh(0) = 0 reproduces the mask).
    w_in_f = (w_in * resp).astype(jnp.float32)                 # (N_INPUTS, N_NODES)
    w_rec_f = (w_rec * resp).astype(jnp.float32)               # (N_NODES, N_NODES)
    bias_f = (bias * mask).reshape(1, N_NODES).astype(jnp.float32)
    params = jnp.concatenate([w_in_f, w_rec_f, bias_f], axis=0)  # (13, N_NODES)

    tile_b = _choose_tile(batch)
    n_tiles = pl.cdiv(batch, tile_b)
    padded = n_tiles * tile_b

    xt = x.T                                                   # (N_INPUTS, batch)
    if padded != batch:
        xt = jnp.pad(xt, ((0, 0), (0, padded - batch)))        # zero-pad tail tile

    flops = int(padded * 2 * N_NODES * (N_INPUTS + n_passes * N_NODES))
    transcendentals = int(padded * N_NODES * n_passes)
    bytes_accessed = int(padded * (N_INPUTS + N_OUTPUTS) * 4 + params.size * 4)

    out_t = pl.pallas_call(
        functools.partial(rnn_agg_kernel, n_passes=n_passes),
        out_shape=jax.ShapeDtypeStruct((N_OUTPUTS, padded), jnp.float32),
        grid=(n_tiles,),
        in_specs=[
            pl.BlockSpec((N_INPUTS, tile_b), lambda i: (0, i)),
            pl.BlockSpec(memory_space=pltpu.MemorySpace.SMEM),   # packed params
        ],
        out_specs=pl.BlockSpec((N_OUTPUTS, tile_b), lambda i: (0, i)),
        scratch_shapes=[
            pltpu.VMEM((N_NODES, tile_b), jnp.float32),          # base
            pltpu.VMEM((N_NODES, tile_b), jnp.float32),          # h (slot A)
            pltpu.VMEM((N_NODES, tile_b), jnp.float32),          # h (slot B)
        ],
        compiler_params=pltpu.CompilerParams(
            dimension_semantics=("parallel",)),
        cost_estimate=pl.CostEstimate(
            flops=flops, transcendentals=transcendentals,
            bytes_accessed=bytes_accessed),
    )(xt, params)

    outputs = out_t[:, :batch].T                                 # (batch, N_OUTPUTS)
    return outputs.reshape(input_size + (N_OUTPUTS,))


# ----------------------------- pure-JAX reference ------------------------------
def reference_activate(inputs, w_in, w_rec, bias, resp, mask, *, n_passes=N_PASSES):
    """Original (unfolded) semantics: h = mask * tanh(bias + resp * (xW_in + hW_rec))."""
    input_size = inputs.shape[:-1]
    x = inputs.reshape(-1, N_INPUTS).astype(jnp.float32)
    h = jnp.zeros((x.shape[0], N_NODES), dtype=jnp.float32)
    for _ in range(n_passes):
        pre = bias + resp * (x @ w_in + h @ w_rec)
        h = mask * jnp.tanh(pre)
    return h[:, :N_OUTPUTS].reshape(input_size + (N_OUTPUTS,))


# ----------------------------------- main --------------------------------------
if __name__ == "__main__":
    w_in, w_rec, bias, resp, mask = build_parameters()

    key = jax.random.PRNGKey(0)
    k1, k2 = jax.random.split(key)

    # CPPN-style input: 16x16 coordinate grid, 4 input channels (batch=256 -> grid of 2 tiles).
    inputs = jax.random.uniform(k1, (16, 16, N_INPUTS), jnp.float32, -1.0, 1.0)
    out = jax.block_until_ready(rnn_agg_activate(inputs, w_in, w_rec, bias, resp, mask))
    ref = reference_activate(inputs, w_in, w_rec, bias, resp, mask)
    assert out.shape == (16, 16, N_OUTPUTS)
    assert jnp.allclose(out, ref, atol=1e-5, rtol=1e-5), "mismatch vs JAX reference (grid case)"

    # Ragged batch (7*9=63 rows) exercises the zero-padded tail-tile path.
    inputs2 = jax.random.uniform(k2, (7, 9, N_INPUTS), jnp.float32, -1.0, 1.0)
    out2 = jax.block_until_ready(rnn_agg_activate(inputs2, w_in, w_rec, bias, resp, mask))
    ref2 = reference_activate(inputs2, w_in, w_rec, bias, resp, mask)
    assert out2.shape == (7, 9, N_OUTPUTS)
    assert jnp.allclose(out2, ref2, atol=1e-5, rtol=1e-5), "mismatch vs JAX reference (ragged case)"

    print("KERNEL_OK")
</pallas_src>

<mosaic_0001>
module attributes {stable_mosaic.version = 11 : i64} {
  func.func @rnn_agg_kernel(%arg0: i32, %arg1: memref<4x128xf32, #tpu.memory_space<vmem>>, %arg2: memref<13x8xf32, #tpu.memory_space<smem>>, %arg3: memref<3x128xf32, #tpu.memory_space<vmem>>, %arg4: memref<8x128xf32, #tpu.memory_space<vmem>>, %arg5: memref<8x128xf32, #tpu.memory_space<vmem>>, %arg6: memref<8x128xf32, #tpu.memory_space<vmem>>) attributes {dimension_semantics = [#tpu.dimension_semantics<parallel>], iteration_bounds = array<i64: 2>, scalar_prefetch = 0 : i64, scratch_operands = 3 : i64, tpu.core_type = #tpu.core_type<tc>, window_params = [{transform_indices = @transform_0, window_bounds = array<i64: 4, 128>}, {transform_indices = @transform_1, window_bounds = array<i64: 13, 8>}, {transform_indices = @transform_2, window_bounds = array<i64: 3, 128>}]} {
    %c0 = arith.constant 0 : index
    %c0_0 = arith.constant 0 : index
    %0 = memref.load %arg2[%c0, %c0_0] : memref<13x8xf32, #tpu.memory_space<smem>>
    %c0_1 = arith.constant 0 : index
    %c0_2 = arith.constant 0 : index
    %1 = vector.load %arg1[%c0_1, %c0_2] : memref<4x128xf32, #tpu.memory_space<vmem>>, vector<1x128xf32>
    %2 = vector.broadcast %0 : f32 to vector<1x128xf32>
    %3 = arith.mulf %2, %1 : vector<1x128xf32>
    %c1 = arith.constant 1 : index
    %c0_3 = arith.constant 0 : index
    %4 = memref.load %arg2[%c1, %c0_3] : memref<13x8xf32, #tpu.memory_space<smem>>
    %c1_4 = arith.constant 1 : index
    %c0_5 = arith.constant 0 : index
    %5 = vector.load %arg1[%c1_4, %c0_5] : memref<4x128xf32, #tpu.memory_space<vmem>>, vector<1x128xf32>
    %6 = vector.broadcast %4 : f32 to vector<1x128xf32>
    %7 = arith.mulf %6, %5 : vector<1x128xf32>
    %8 = arith.addf %3, %7 : vector<1x128xf32>
    %c2 = arith.constant 2 : index
    %c0_6 = arith.constant 0 : index
    %9 = memref.load %arg2[%c2, %c0_6] : memref<13x8xf32, #tpu.memory_space<smem>>
    %c2_7 = arith.constant 2 : index
    %c0_8 = arith.constant 0 : index
    %10 = vector.load %arg1[%c2_7, %c0_8] : memref<4x128xf32, #tpu.memory_space<vmem>>, vector<1x128xf32>
    %11 = vector.broadcast %9 : f32 to vector<1x128xf32>
    %12 = arith.mulf %11, %10 : vector<1x128xf32>
    %13 = arith.addf %8, %12 : vector<1x128xf32>
    %c3 = arith.constant 3 : index
    %c0_9 = arith.constant 0 : index
    %14 = memref.load %arg2[%c3, %c0_9] : memref<13x8xf32, #tpu.memory_space<smem>>
    %c3_10 = arith.constant 3 : index
    %c0_11 = arith.constant 0 : index
    %15 = vector.load %arg1[%c3_10, %c0_11] : memref<4x128xf32, #tpu.memory_space<vmem>>, vector<1x128xf32>
    %16 = vector.broadcast %14 : f32 to vector<1x128xf32>
    %17 = arith.mulf %16, %15 : vector<1x128xf32>
    %18 = arith.addf %13, %17 : vector<1x128xf32>
    %c12 = arith.constant 12 : index
    %c0_12 = arith.constant 0 : index
    %19 = memref.load %arg2[%c12, %c0_12] : memref<13x8xf32, #tpu.memory_space<smem>>
    %20 = vector.broadcast %19 : f32 to vector<1x128xf32>
    %21 = arith.addf %18, %20 : vector<1x128xf32>
    %c0_13 = arith.constant 0 : index
    %c0_14 = arith.constant 0 : index
    %22 = vector.load %arg4[%c0_13, %c0_14] : memref<8x128xf32, #tpu.memory_space<vmem>>, vector<1x128xf32>
    tpu.vector_store %arg4[%c0_13, %c0_14], %21 {strides = array<i32>} : memref<8x128xf32, #tpu.memory_space<vmem>>, vector<1x128xf32>,
    %23 = math.tanh %21 : vector<1x128xf32>
    %c0_15 = arith.constant 0 : index
    %c0_16 = arith.constant 0 : index
    %24 = vector.load %arg5[%c0_15, %c0_16] : memref<8x128xf32, #tpu.memory_space<vmem>>, vector<1x128xf32>
    tpu.vector_store %arg5[%c0_15, %c0_16], %23 {strides = array<i32>} : memref<8x128xf32, #tpu.memory_space<vmem>>, vector<1x128xf32>,
    %c0_17 = arith.constant 0 : index
    %c1_18 = arith.constant 1 : index
    %25 = memref.load %arg2[%c0_17, %c1_18] : memref<13x8xf32, #tpu.memory_space<smem>>
    %c0_19 = arith.constant 0 : index
    %c0_20 = arith.constant 0 : index
    %26 = vector.load %arg1[%c0_19, %c0_20] : memref<4x128xf32, #tpu.memory_space<vmem>>, vector<1x128xf32>
    %27 = vector.broadcast %25 : f32 to vector<1x128xf32>
    %28 = arith.mulf %27, %26 : vector<1x128xf32>
    %c1_21 = arith.constant 1 : index
    %c1_22 = arith.constant 1 : index
    %29 = memref.load %arg2[%c1_21, %c1_22] : memref<13x8xf32, #tpu.memory_space<smem>>
    %c1_23 = arith.constant 1 : index
    %c0_24 = arith.constant 0 : index
    %30 = vector.load %arg1[%c1_23, %c0_24] : memref<4x128xf32, #tpu.memory_space<vmem>>, vector<1x128xf32>
    %31 = vector.broadcast %29 : f32 to vector<1x128xf32>
    %32 = arith.mulf %31, %30 : vector<1x128xf32>
    %33 = arith.addf %28, %32 : vector<1x128xf32>
    %c2_25 = arith.constant 2 : index
    %c1_26 = arith.constant 1 : index
    %34 = memref.load %arg2[%c2_25, %c1_26] : memref<13x8xf32, #tpu.memory_space<smem>>
    %c2_27 = arith.constant 2 : index
    %c0_28 = arith.constant 0 : index
    %35 = vector.load %arg1[%c2_27, %c0_28] : memref<4x128xf32, #tpu.memory_space<vmem>>, vector<1x128xf32>
    %36 = vector.broadcast %34 : f32 to vector<1x128xf32>
    %37 = arith.mulf %36, %35 : vector<1x128xf32>
    %38 = arith.addf %33, %37 : vector<1x128xf32>
    %c3_29 = arith.constant 3 : index
    %c1_30 = arith.constant 1 : index
    %39 = memref.load %arg2[%c3_29, %c1_30] : memref<13x8xf32, #tpu.memory_space<smem>>
    %c3_31 = arith.constant 3 : index
    %c0_32 = arith.constant 0 : index
    %40 = vector.load %arg1[%c3_31, %c0_32] : memref<4x128xf32, #tpu.memory_space<vmem>>, vector<1x128xf32>
    %41 = vector.broadcast %39 : f32 to vector<1x128xf32>
    %42 = arith.mulf %41, %40 : vector<1x128xf32>
    %43 = arith.addf %38, %42 : vector<1x128xf32>
    %c12_33 = arith.constant 12 : index
    %c1_34 = arith.constant 1 : index
    %44 = memref.load %arg2[%c12_33, %c1_34] : memref<13x8xf32, #tpu.memory_space<smem>>
    %45 = vector.broadcast %44 : f32 to vector<1x128xf32>
    %46 = arith.addf %43, %45 : vector<1x128xf32>
    %c1_35 = arith.constant 1 : index
    %c0_36 = arith.constant 0 : index
    %47 = vector.load %arg4[%c1_35, %c0_36] : memref<8x128xf32, #tpu.memory_space<vmem>>, vector<1x128xf32>
    tpu.vector_store %arg4[%c1_35, %c0_36], %46 {strides = array<i32>} : memref<8x128xf32, #tpu.memory_space<vmem>>, vector<1x128xf32>,
    %48 = math.tanh %46 : vector<1x128xf32>
    %c1_37 = arith.constant 1 : index
    %c0_38 = arith.constant 0 : index
    %49 = vector.load %arg5[%c1_37, %c0_38] : memref<8x128xf32, #tpu.memory_space<vmem>>, vector<1x128xf32>
    tpu.vector_store %arg5[%c1_37, %c0_38], %48 {strides = array<i32>} : memref<8x128xf32, #tpu.memory_space<vmem>>, vector<1x128xf32>,
    %c0_39 = arith.constant 0 : index
    %c2_40 = arith.constant 2 : index
    %50 = memref.load %arg2[%c0_39, %c2_40] : memref<13x8xf32, #tpu.memory_space<smem>>
    %c0_41 = arith.constant 0 : index
    %c0_42 = arith.constant 0 : index
    %51 = vector.load %arg1[%c0_41, %c0_42] : memref<4x128xf32, #tpu.memory_space<vmem>>, vector<1x128xf32>
    %52 = vector.broadcast %50 : f32 to vector<1x128xf32>
    %53 = arith.mulf %52, %51 : vector<1x128xf32>
    %c1_43 = arith.constant 1 : index
    %c2_44 = arith.constant 2 : index
    %54 = memref.load %arg2[%c1_43, %c2_44] : memref<13x8xf32, #tpu.memory_space<smem>>
    %c1_45 = arith.constant 1 : index
    %c0_46 = arith.constant 0 : index
    %55 = vector.load %arg1[%c1_45, %c0_46] : memref<4x128xf32, #tpu.memory_space<vmem>>, vector<1x128xf32>
    %56 = vector.broadcast %54 : f32 to vector<1x128xf32>
    %57 = arith.mulf %56, %55 : vector<1x128xf32>
    %58 = arith.addf %53, %57 : vector<1x128xf32>
    %c2_47 = arith.constant 2 : index
    %c2_48 = arith.constant 2 : index
    %59 = memref.load %arg2[%c2_47, %c2_48] : memref<13x8xf32, #tpu.memory_space<smem>>
    %c2_49 = arith.constant 2 : index
    %c0_50 = arith.constant 0 : index
    %60 = vector.load %arg1[%c2_49, %c0_50] : memref<4x128xf32, #tpu.memory_space<vmem>>, vector<1x128xf32>
    %61 = vector.broadcast %59 : f32 to vector<1x128xf32>
    %62 = arith.mulf %61, %60 : vector<1x128xf32>
    %63 = arith.addf %58, %62 : vector<1x128xf32>
    %c3_51 = arith.constant 3 : index
    %c2_52 = arith.constant 2 : index
    %64 = memref.load %arg2[%c3_51, %c2_52] : memref<13x8xf32, #tpu.memory_space<smem>>
    %c3_53 = arith.constant 3 : index
    %c0_54 = arith.constant 0 : index
    %65 = vector.load %arg1[%c3_53, %c0_54] : memref<4x128xf32, #tpu.memory_space<vmem>>, vector<1x128xf32>
    %66 = vector.broadcast %64 : f32 to vector<1x128xf32>
    %67 = arith.mulf %66, %65 : vector<1x128xf32>
    %68 = arith.addf %63, %67 : vector<1x128xf32>
    %c12_55 = arith.constant 12 : index
    %c2_56 = arith.constant 2 : index
    %69 = memref.load %arg2[%c12_55, %c2_56] : memref<13x8xf32, #tpu.memory_space<smem>>
    %70 = vector.broadcast %69 : f32 to vector<1x128xf32>
    %71 = arith.addf %68, %70 : vector<1x128xf32>
    %c2_57 = arith.constant 2 : index
    %c0_58 = arith.constant 0 : index
    %72 = vector.load %arg4[%c2_57, %c0_58] : memref<8x128xf32, #tpu.memory_space<vmem>>, vector<1x128xf32>
    tpu.vector_store %arg4[%c2_57, %c0_58], %71 {strides = array<i32>} : memref<8x128xf32, #tpu.memory_space<vmem>>, vector<1x128xf32>,
    %73 = math.tanh %71 : vector<1x128xf32>
    %c2_59 = arith.constant 2 : index
    %c0_60 = arith.constant 0 : index
    %74 = vector.load %arg5[%c2_59, %c0_60] : memref<8x128xf32, #tpu.memory_space<vmem>>, vector<1x128xf32>
    tpu.vector_store %arg5[%c2_59, %c0_60], %73 {strides = array<i32>} : memref<8x128xf32, #tpu.memory_space<vmem>>, vector<1x128xf32>,
    %c0_61 = arith.constant 0 : index
    %c3_62 = arith.constant 3 : index
    %75 = memref.load %arg2[%c0_61, %c3_62] : memref<13x8xf32, #tpu.memory_space<smem>>
    %c0_63 = arith.constant 0 : index
    %c0_64 = arith.constant 0 : index
    %76 = vector.load %arg1[%c0_63, %c0_64] : memref<4x128xf32, #tpu.memory_space<vmem>>, vector<1x128xf32>
    %77 = vector.broadcast %75 : f32 to vector<1x128xf32>
    %78 = arith.mulf %77, %76 : vector<1x128xf32>
    %c1_65 = arith.constant 1 : index
    %c3_66 = arith.constant 3 : index
    %79 = memref.load %arg2[%c1_65, %c3_66] : memref<13x8xf32, #tpu.memory_space<smem>>
    %c1_67 = arith.constant 1 : index
    %c0_68 = arith.constant 0 : index
    %80 = vector.load %arg1[%c1_67, %c0_68] : memref<4x128xf32, #tpu.memory_space<vmem>>, vector<1x128xf32>
    %81 = vector.broadcast %79 : f32 to vector<1x128xf32>
    %82 = arith.mulf %81, %80 : vector<1x128xf32>
    %83 = arith.addf %78, %82 : vector<1x128xf32>
    %c2_69 = arith.constant 2 : index
    %c3_70 = arith.constant 3 : index
    %84 = memref.load %arg2[%c2_69, %c3_70] : memref<13x8xf32, #tpu.memory_space<smem>>
    %c2_71 = arith.constant 2 : index
    %c0_72 = arith.constant 0 : index
    %85 = vector.load %arg1[%c2_71, %c0_72] : memref<4x128xf32, #tpu.memory_space<vmem>>, vector<1x128xf32>
    %86 = vector.broadcast %84 : f32 to vector<1x128xf32>
    %87 = arith.mulf %86, %85 : vector<1x128xf32>
    %88 = arith.addf %83, %87 : vector<1x128xf32>
    %c3_73 = arith.constant 3 : index
    %c3_74 = arith.constant 3 : index
    %89 = memref.load %arg2[%c3_73, %c3_74] : memref<13x8xf32, #tpu.memory_space<smem>>
    %c3_75 = arith.constant 3 : index
    %c0_76 = arith.constant 0 : index
    %90 = vector.load %arg1[%c3_75, %c0_76] : memref<4x128xf32, #tpu.memory_space<vmem>>, vector<1x128xf32>
    %91 = vector.broadcast %89 : f32 to vector<1x128xf32>
    %92 = arith.mulf %91, %90 : vector<1x128xf32>
    %93 = arith.addf %88, %92 : vector<1x128xf32>
    %c12_77 = arith.constant 12 : index
    %c3_78 = arith.constant 3 : index
    %94 = memref.load %arg2[%c12_77, %c3_78] : memref<13x8xf32, #tpu.memory_space<smem>>
    %95 = vector.broadcast %94 : f32 to vector<1x128xf32>
    %96 = arith.addf %93, %95 : vector<1x128xf32>
    %c3_79 = arith.constant 3 : index
    %c0_80 = arith.constant 0 : index
    %97 = vector.load %arg4[%c3_79, %c0_80] : memref<8x128xf32, #tpu.memory_space<vmem>>, vector<1x128xf32>
    tpu.vector_store %arg4[%c3_79, %c0_80], %96 {strides = array<i32>} : memref<8x128xf32, #tpu.memory_space<vmem>>, vector<1x128xf32>,
    %98 = math.tanh %96 : vector<1x128xf32>
    %c3_81 = arith.constant 3 : index
    %c0_82 = arith.constant 0 : index
    %99 = vector.load %arg5[%c3_81, %c0_82] : memref<8x128xf32, #tpu.memory_space<vmem>>, vector<1x128xf32>
    tpu.vector_store %arg5[%c3_81, %c0_82], %98 {strides = array<i32>} : memref<8x128xf32, #tpu.memory_space<vmem>>, vector<1x128xf32>,
    %c0_83 = arith.constant 0 : index
    %c4 = arith.constant 4 : index
    %100 = memref.load %arg2[%c0_83, %c4] : memref<13x8xf32, #tpu.memory_space<smem>>
    %c0_84 = arith.constant 0 : index
    %c0_85 = arith.constant 0 : index
    %101 = vector.load %arg1[%c0_84, %c0_85] : memref<4x128xf32, #tpu.memory_space<vmem>>, vector<1x128xf32>
    %102 = vector.broadcast %100 : f32 to vector<1x128xf32>
    %103 = arith.mulf %102, %101 : vector<1x128xf32>
    %c1_86 = arith.constant 1 : index
    %c4_87 = arith.constant 4 : index
    %104 = memref.load %arg2[%c1_86, %c4_87] : memref<13x8xf32, #tpu.memory_space<smem>>
    %c1_88 = arith.constant 1 : index
    %c0_89 = arith.constant 0 : index
    %105 = vector.load %arg1[%c1_88, %c0_89] : memref<4x128xf32, #tpu.memory_space<vmem>>, vector<1x128xf32>
    %106 = vector.broadcast %104 : f32 to vector<1x128xf32>
    %107 = arith.mulf %106, %105 : vector<1x128xf32>
    %108 = arith.addf %103, %107 : vector<1x128xf32>
    %c2_90 = arith.constant 2 : index
    %c4_91 = arith.constant 4 : index
    %109 = memref.load %arg2[%c2_90, %c4_91] : memref<13x8xf32, #tpu.memory_space<smem>>
    %c2_92 = arith.constant 2 : index
    %c0_93 = arith.constant 0 : index
    %110 = vector.load %arg1[%c2_92, %c0_93] : memref<4x128xf32, #tpu.memory_space<vmem>>, vector<1x128xf32>
    %111 = vector.broadcast %109 : f32 to vector<1x128xf32>
    %112 = arith.mulf %111, %110 : vector<1x128xf32>
    %113 = arith.addf %108, %112 : vector<1x128xf32>
    %c3_94 = arith.constant 3 : index
    %c4_95 = arith.constant 4 : index
    %114 = memref.load %arg2[%c3_94, %c4_95] : memref<13x8xf32, #tpu.memory_space<smem>>
    %c3_96 = arith.constant 3 : index
    %c0_97 = arith.constant 0 : index
    %115 = vector.load %arg1[%c3_96, %c0_97] : memref<4x128xf32, #tpu.memory_space<vmem>>, vector<1x128xf32>
    %116 = vector.broadcast %114 : f32 to vector<1x128xf32>
    %117 = arith.mulf %116, %115 : vector<1x128xf32>
    %118 = arith.addf %113, %117 : vector<1x128xf32>
    %c12_98 = arith.constant 12 : index
    %c4_99 = arith.constant 4 : index
    %119 = memref.load %arg2[%c12_98, %c4_99] : memref<13x8xf32, #tpu.memory_space<smem>>
    %120 = vector.broadcast %119 : f32 to vector<1x128xf32>
    %121 = arith.addf %118, %120 : vector<1x128xf32>
    %c4_100 = arith.constant 4 : index
    %c0_101 = arith.constant 0 : index
    %122 = vector.load %arg4[%c4_100, %c0_101] : memref<8x128xf32, #tpu.memory_space<vmem>>, vector<1x128xf32>
    tpu.vector_store %arg4[%c4_100, %c0_101], %121 {strides = array<i32>} : memref<8x128xf32, #tpu.memory_space<vmem>>, vector<1x128xf32>,
    %123 = math.tanh %121 : vector<1x128xf32>
    %c4_102 = arith.constant 4 : index
    %c0_103 = arith.constant 0 : index
    %124 = vector.load %arg5[%c4_102, %c0_103] : memref<8x128xf32, #tpu.memory_space<vmem>>, vector<1x128xf32>
    tpu.vector_store %arg5[%c4_102, %c0_103], %123 {strides = array<i32>} : memref<8x128xf32, #tpu.memory_space<vmem>>, vector<1x128xf32>,
    %c0_104 = arith.constant 0 : index
    %c5 = arith.constant 5 : index
    %125 = memref.load %arg2[%c0_104, %c5] : memref<13x8xf32, #tpu.memory_space<smem>>
    %c0_105 = arith.constant 0 : index
    %c0_106 = arith.constant 0 : index
    %126 = vector.load %arg1[%c0_105, %c0_106] : memref<4x128xf32, #tpu.memory_space<vmem>>, vector<1x128xf32>
    %127 = vector.broadcast %125 : f32 to vector<1x128xf32>
    %128 = arith.mulf %127, %126 : vector<1x128xf32>
    %c1_107 = arith.constant 1 : index
    %c5_108 = arith.constant 5 : index
    %129 = memref.load %arg2[%c1_107, %c5_108] : memref<13x8xf32, #tpu.memory_space<smem>>
    %c1_109 = arith.constant 1 : index
    %c0_110 = arith.constant 0 : index
    %130 = vector.load %arg1[%c1_109, %c0_110] : memref<4x128xf32, #tpu.memory_space<vmem>>, vector<1x128xf32>
    %131 = vector.broadcast %129 : f32 to vector<1x128xf32>
    %132 = arith.mulf %131, %130 : vector<1x128xf32>
    %133 = arith.addf %128, %132 : vector<1x128xf32>
    %c2_111 = arith.constant 2 : index
    %c5_112 = arith.constant 5 : index
    %134 = memref.load %arg2[%c2_111, %c5_112] : memref<13x8xf32, #tpu.memory_space<smem>>
    %c2_113 = arith.constant 2 : index
    %c0_114 = arith.constant 0 : index
    %135 = vector.load %arg1[%c2_113, %c0_114] : memref<4x128xf32, #tpu.memory_space<vmem>>, vector<1x128xf32>
    %136 = vector.broadcast %134 : f32 to vector<1x128xf32>
    %137 = arith.mulf %136, %135 : vector<1x128xf32>
    %138 = arith.addf %133, %137 : vector<1x128xf32>
    %c3_115 = arith.constant 3 : index
    %c5_116 = arith.constant 5 : index
    %139 = memref.load %arg2[%c3_115, %c5_116] : memref<13x8xf32, #tpu.memory_space<smem>>
    %c3_117 = arith.constant 3 : index
    %c0_118 = arith.constant 0 : index
    %140 = vector.load %arg1[%c3_117, %c0_118] : memref<4x128xf32, #tpu.memory_space<vmem>>, vector<1x128xf32>
    %141 = vector.broadcast %139 : f32 to vector<1x128xf32>
    %142 = arith.mulf %141, %140 : vector<1x128xf32>
    %143 = arith.addf %138, %142 : vector<1x128xf32>
    %c12_119 = arith.constant 12 : index
    %c5_120 = arith.constant 5 : index
    %144 = memref.load %arg2[%c12_119, %c5_120] : memref<13x8xf32, #tpu.memory_space<smem>>
    %145 = vector.broadcast %144 : f32 to vector<1x128xf32>
    %146 = arith.addf %143, %145 : vector<1x128xf32>
    %c5_121 = arith.constant 5 : index
    %c0_122 = arith.constant 0 : index
    %147 = vector.load %arg4[%c5_121, %c0_122] : memref<8x128xf32, #tpu.memory_space<vmem>>, vector<1x128xf32>
    tpu.vector_store %arg4[%c5_121, %c0_122], %146 {strides = array<i32>} : memref<8x128xf32, #tpu.memory_space<vmem>>, vector<1x128xf32>,
    %148 = math.tanh %146 : vector<1x128xf32>
    %c5_123 = arith.constant 5 : index
    %c0_124 = arith.constant 0 : index
    %149 = vector.load %arg5[%c5_123, %c0_124] : memref<8x128xf32, #tpu.memory_space<vmem>>, vector<1x128xf32>
    tpu.vector_store %arg5[%c5_123, %c0_124], %148 {strides = array<i32>} : memref<8x128xf32, #tpu.memory_space<vmem>>, vector<1x128xf32>,
    %c0_125 = arith.constant 0 : index
    %c6 = arith.constant 6 : index
    %150 = memref.load %arg2[%c0_125, %c6] : memref<13x8xf32, #tpu.memory_space<smem>>
    %c0_126 = arith.constant 0 : index
    %c0_127 = arith.constant 0 : index
    %151 = vector.load %arg1[%c0_126, %c0_127] : memref<4x128xf32, #tpu.memory_space<vmem>>, vector<1x128xf32>
    %152 = vector.broadcast %150 : f32 to vector<1x128xf32>
    %153 = arith.mulf %152, %151 : vector<1x128xf32>
    %c1_128 = arith.constant 1 : index
    %c6_129 = arith.constant 6 : index
    %154 = memref.load %arg2[%c1_128, %c6_129] : memref<13x8xf32, #tpu.memory_space<smem>>
    %c1_130 = arith.constant 1 : index
    %c0_131 = arith.constant 0 : index
    %155 = vector.load %arg1[%c1_130, %c0_131] : memref<4x128xf32, #tpu.memory_space<vmem>>, vector<1x128xf32>
    %156 = vector.broadcast %154 : f32 to vector<1x128xf32>
    %157 = arith.mulf %156, %155 : vector<1x128xf32>
    %158 = arith.addf %153, %157 : vector<1x128xf32>
    %c2_132 = arith.constant 2 : index
    %c6_133 = arith.constant 6 : index
    %159 = memref.load %arg2[%c2_132, %c6_133] : memref<13x8xf32, #tpu.memory_space<smem>>
    %c2_134 = arith.constant 2 : index
    %c0_135 = arith.constant 0 : index
    %160 = vector.load %arg1[%c2_134, %c0_135] : memref<4x128xf32, #tpu.memory_space<vmem>>, vector<1x128xf32>
    %161 = vector.broadcast %159 : f32 to vector<1x128xf32>
    %162 = arith.mulf %161, %160 : vector<1x128xf32>
    %163 = arith.addf %158, %162 : vector<1x128xf32>
    %c3_136 = arith.constant 3 : index
    %c6_137 = arith.constant 6 : index
    %164 = memref.load %arg2[%c3_136, %c6_137] : memref<13x8xf32, #tpu.memory_space<smem>>
    %c3_138 = arith.constant 3 : index
    %c0_139 = arith.constant 0 : index
    %165 = vector.load %arg1[%c3_138, %c0_139] : memref<4x128xf32, #tpu.memory_space<vmem>>, vector<1x128xf32>
    %166 = vector.broadcast %164 : f32 to vector<1x128xf32>
    %167 = arith.mulf %166, %165 : vector<1x128xf32>
    %168 = arith.addf %163, %167 : vector<1x128xf32>
    %c12_140 = arith.constant 12 : index
    %c6_141 = arith.constant 6 : index
    %169 = memref.load %arg2[%c12_140, %c6_141] : memref<13x8xf32, #tpu.memory_space<smem>>
    %170 = vector.broadcast %169 : f32 to vector<1x128xf32>
    %171 = arith.addf %168, %170 : vector<1x128xf32>
    %c6_142 = arith.constant 6 : index
    %c0_143 = arith.constant 0 : index
    %172 = vector.load %arg4[%c6_142, %c0_143] : memref<8x128xf32, #tpu.memory_space<vmem>>, vector<1x128xf32>
    tpu.vector_store %arg4[%c6_142, %c0_143], %171 {strides = array<i32>} : memref<8x128xf32, #tpu.memory_space<vmem>>, vector<1x128xf32>,
    %173 = math.tanh %171 : vector<1x128xf32>
    %c6_144 = arith.constant 6 : index
    %c0_145 = arith.constant 0 : index
    %174 = vector.load %arg5[%c6_144, %c0_145] : memref<8x128xf32, #tpu.memory_space<vmem>>, vector<1x128xf32>
    tpu.vector_store %arg5[%c6_144, %c0_145], %173 {strides = array<i32>} : memref<8x128xf32, #tpu.memory_space<vmem>>, vector<1x128xf32>,
    %c0_146 = arith.constant 0 : index
    %c7 = arith.constant 7 : index
    %175 = memref.load %arg2[%c0_146, %c7] : memref<13x8xf32, #tpu.memory_space<smem>>
    %c0_147 = arith.constant 0 : index
    %c0_148 = arith.constant 0 : index
    %176 = vector.load %arg1[%c0_147, %c0_148] : memref<4x128xf32, #tpu.memory_space<vmem>>, vector<1x128xf32>
    %177 = vector.broadcast %175 : f32 to vector<1x128xf32>
    %178 = arith.mulf %177, %176 : vector<1x128xf32>
    %c1_149 = arith.constant 1 : index
    %c7_150 = arith.constant 7 : index
    %179 = memref.load %arg2[%c1_149, %c7_150] : memref<13x8xf32, #tpu.memory_space<smem>>
    %c1_151 = arith.constant 1 : index
    %c0_152 = arith.constant 0 : index
    %180 = vector.load %arg1[%c1_151, %c0_152] : memref<4x128xf32, #tpu.memory_space<vmem>>, vector<1x128xf32>
    %181 = vector.broadcast %179 : f32 to vector<1x128xf32>
    %182 = arith.mulf %181, %180 : vector<1x128xf32>
    %183 = arith.addf %178, %182 : vector<1x128xf32>
    %c2_153 = arith.constant 2 : index
    %c7_154 = arith.constant 7 : index
    %184 = memref.load %arg2[%c2_153, %c7_154] : memref<13x8xf32, #tpu.memory_space<smem>>
    %c2_155 = arith.constant 2 : index
    %c0_156 = arith.constant 0 : index
    %185 = vector.load %arg1[%c2_155, %c0_156] : memref<4x128xf32, #tpu.memory_space<vmem>>, vector<1x128xf32>
    %186 = vector.broadcast %184 : f32 to vector<1x128xf32>
    %187 = arith.mulf %186, %185 : vector<1x128xf32>
    %188 = arith.addf %183, %187 : vector<1x128xf32>
    %c3_157 = arith.constant 3 : index
    %c7_158 = arith.constant 7 : index
    %189 = memref.load %arg2[%c3_157, %c7_158] : memref<13x8xf32, #tpu.memory_space<smem>>
    %c3_159 = arith.constant 3 : index
    %c0_160 = arith.constant 0 : index
    %190 = vector.load %arg1[%c3_159, %c0_160] : memref<4x128xf32, #tpu.memory_space<vmem>>, vector<1x128xf32>
    %191 = vector.broadcast %189 : f32 to vector<1x128xf32>
    %192 = arith.mulf %191, %190 : vector<1x128xf32>
    %193 = arith.addf %188, %192 : vector<1x128xf32>
    %c12_161 = arith.constant 12 : index
    %c7_162 = arith.constant 7 : index
    %194 = memref.load %arg2[%c12_161, %c7_162] : memref<13x8xf32, #tpu.memory_space<smem>>
    %195 = vector.broadcast %194 : f32 to vector<1x128xf32>
    %196 = arith.addf %193, %195 : vector<1x128xf32>
    %c7_163 = arith.constant 7 : index
    %c0_164 = arith.constant 0 : index
    %197 = vector.load %arg4[%c7_163, %c0_164] : memref<8x128xf32, #tpu.memory_space<vmem>>, vector<1x128xf32>
    tpu.vector_store %arg4[%c7_163, %c0_164], %196 {strides = array<i32>} : memref<8x128xf32, #tpu.memory_space<vmem>>, vector<1x128xf32>,
    %198 = math.tanh %196 : vector<1x128xf32>
    %c7_165 = arith.constant 7 : index
    %c0_166 = arith.constant 0 : index
    %199 = vector.load %arg5[%c7_165, %c0_166] : memref<8x128xf32, #tpu.memory_space<vmem>>, vector<1x128xf32>
    tpu.vector_store %arg5[%c7_165, %c0_166], %198 {strides = array<i32>} : memref<8x128xf32, #tpu.memory_space<vmem>>, vector<1x128xf32>,
    %c0_167 = arith.constant 0 : index
    %c0_168 = arith.constant 0 : index
    %200 = vector.load %arg4[%c0_167, %c0_168] : memref<8x128xf32, #tpu.memory_space<vmem>>, vector<1x128xf32>
    %c4_169 = arith.constant 4 : index
    %c0_170 = arith.constant 0 : index
    %201 = memref.load %arg2[%c4_169, %c0_170] : memref<13x8xf32, #tpu.memory_space<smem>>
    %c0_171 = arith.constant 0 : index
    %c0_172 = arith.constant 0 : index
    %202 = vector.load %arg5[%c0_171, %c0_172] : memref<8x128xf32, #tpu.memory_space<vmem>>, vector<1x128xf32>
    %203 = vector.broadcast %201 : f32 to vector<1x128xf32>
    %204 = arith.mulf %203, %202 : vector<1x128xf32>
    %205 = arith.addf %200, %204 : vector<1x128xf32>
    %c5_173 = arith.constant 5 : index
    %c0_174 = arith.constant 0 : index
    %206 = memref.load %arg2[%c5_173, %c0_174] : memref<13x8xf32, #tpu.memory_space<smem>>
    %c1_175 = arith.constant 1 : index
    %c0_176 = arith.constant 0 : index
    %207 = vector.load %arg5[%c1_175, %c0_176] : memref<8x128xf32, #tpu.memory_space<vmem>>, vector<1x128xf32>
    %208 = vector.broadcast %206 : f32 to vector<1x128xf32>
    %209 = arith.mulf %208, %207 : vector<1x128xf32>
    %210 = arith.addf %205, %209 : vector<1x128xf32>
    %c6_177 = arith.constant 6 : index
    %c0_178 = arith.constant 0 : index
    %211 = memref.load %arg2[%c6_177, %c0_178] : memref<13x8xf32, #tpu.memory_space<smem>>
    %c2_179 = arith.constant 2 : index
    %c0_180 = arith.constant 0 : index
    %212 = vector.load %arg5[%c2_179, %c0_180] : memref<8x128xf32, #tpu.memory_space<vmem>>, vector<1x128xf32>
    %213 = vector.broadcast %211 : f32 to vector<1x128xf32>
    %214 = arith.mulf %213, %212 : vector<1x128xf32>
    %215 = arith.addf %210, %214 : vector<1x128xf32>
    %c7_181 = arith.constant 7 : index
    %c0_182 = arith.constant 0 : index
    %216 = memref.load %arg2[%c7_181, %c0_182] : memref<13x8xf32, #tpu.memory_space<smem>>
    %c3_183 = arith.constant 3 : index
    %c0_184 = arith.constant 0 : index
    %217 = vector.load %arg5[%c3_183, %c0_184] : memref<8x128xf32, #tpu.memory_space<vmem>>, vector<1x128xf32>
    %218 = vector.broadcast %216 : f32 to vector<1x128xf32>
    %219 = arith.mulf %218, %217 : vector<1x128xf32>
    %220 = arith.addf %215, %219 : vector<1x128xf32>
    %c8 = arith.constant 8 : index
    %c0_185 = arith.constant 0 : index
    %221 = memref.load %arg2[%c8, %c0_185] : memref<13x8xf32, #tpu.memory_space<smem>>
    %c4_186 = arith.constant 4 : index
    %c0_187 = arith.constant 0 : index
    %222 = vector.load %arg5[%c4_186, %c0_187] : memref<8x128xf32, #tpu.memory_space<vmem>>, vector<1x128xf32>
    %223 = vector.broadcast %221 : f32 to vector<1x128xf32>
    %224 = arith.mulf %223, %222 : vector<1x128xf32>
    %225 = arith.addf %220, %224 : vector<1x128xf32>
    %c9 = arith.constant 9 : index
    %c0_188 = arith.constant 0 : index
    %226 = memref.load %arg2[%c9, %c0_188] : memref<13x8xf32, #tpu.memory_space<smem>>
    %c5_189 = arith.constant 5 : index
    %c0_190 = arith.constant 0 : index
    %227 = vector.load %arg5[%c5_189, %c0_190] : memref<8x128xf32, #tpu.memory_space<vmem>>, vector<1x128xf32>
    %228 = vector.broadcast %226 : f32 to vector<1x128xf32>
    %229 = arith.mulf %228, %227 : vector<1x128xf32>
    %230 = arith.addf %225, %229 : vector<1x128xf32>
    %c10 = arith.constant 10 : index
    %c0_191 = arith.constant 0 : index
    %231 = memref.load %arg2[%c10, %c0_191] : memref<13x8xf32, #tpu.memory_space<smem>>
    %c6_192 = arith.constant 6 : index
    %c0_193 = arith.constant 0 : index
    %232 = vector.load %arg5[%c6_192, %c0_193] : memref<8x128xf32, #tpu.memory_space<vmem>>, vector<1x128xf32>
    %233 = vector.broadcast %231 : f32 to vector<1x128xf32>
    %234 = arith.mulf %233, %232 : vector<1x128xf32>
    %235 = arith.addf %230, %234 : vector<1x128xf32>
    %c11 = arith.constant 11 : index
    %c0_194 = arith.constant 0 : index
    %236 = memref.load %arg2[%c11, %c0_194] : memref<13x8xf32, #tpu.memory_space<smem>>
    %c7_195 = arith.constant 7 : index
    %c0_196 = arith.constant 0 : index
    %237 = vector.load %arg5[%c7_195, %c0_196] : memref<8x128xf32, #tpu.memory_space<vmem>>, vector<1x128xf32>
    %238 = vector.broadcast %236 : f32 to vector<1x128xf32>
    %239 = arith.mulf %238, %237 : vector<1x128xf32>
    %240 = arith.addf %235, %239 : vector<1x128xf32>
    %241 = math.tanh %240 : vector<1x128xf32>
    %c0_197 = arith.constant 0 : index
    %c0_198 = arith.constant 0 : index
    %242 = vector.load %arg6[%c0_197, %c0_198] : memref<8x128xf32, #tpu.memory_space<vmem>>, vector<1x128xf32>
    tpu.vector_store %arg6[%c0_197, %c0_198], %241 {strides = array<i32>} : memref<8x128xf32, #tpu.memory_space<vmem>>, vector<1x128xf32>,
    %c1_199 = arith.constant 1 : index
    %c0_200 = arith.constant 0 : index
    %243 = vector.load %arg4[%c1_199, %c0_200] : memref<8x128xf32, #tpu.memory_space<vmem>>, vector<1x128xf32>
    %c4_201 = arith.constant 4 : index
    %c1_202 = arith.constant 1 : index
    %244 = memref.load %arg2[%c4_201, %c1_202] : memref<13x8xf32, #tpu.memory_space<smem>>
    %c0_203 = arith.constant 0 : index
    %c0_204 = arith.constant 0 : index
    %245 = vector.load %arg5[%c0_203, %c0_204] : memref<8x128xf32, #tpu.memory_space<vmem>>, vector<1x128xf32>
    %246 = vector.broadcast %244 : f32 to vector<1x128xf32>
    %247 = arith.mulf %246, %245 : vector<1x128xf32>
    %248 = arith.addf %243, %247 : vector<1x128xf32>
    %c5_205 = arith.constant 5 : index
    %c1_206 = arith.constant 1 : index
    %249 = memref.load %arg2[%c5_205, %c1_206] : memref<13x8xf32, #tpu.memory_space<smem>>
    %c1_207 = arith.constant 1 : index
    %c0_208 = arith.constant 0 : index
    %250 = vector.load %arg5[%c1_207, %c0_208] : memref<8x128xf32, #tpu.memory_space<vmem>>, vector<1x128xf32>
    %251 = vector.broadcast %249 : f32 to vector<1x128xf32>
    %252 = arith.mulf %251, %250 : vector<1x128xf32>
    %253 = arith.addf %248, %252 : vector<1x128xf32>
    %c6_209 = arith.constant 6 : index
    %c1_210 = arith.constant 1 : index
    %254 = memref.load %arg2[%c6_209, %c1_210] : memref<13x8xf32, #tpu.memory_space<smem>>
    %c2_211 = arith.constant 2 : index
    %c0_212 = arith.constant 0 : index
    %255 = vector.load %arg5[%c2_211, %c0_212] : memref<8x128xf32, #tpu.memory_space<vmem>>, vector<1x128xf32>
    %256 = vector.broadcast %254 : f32 to vector<1x128xf32>
    %257 = arith.mulf %256, %255 : vector<1x128xf32>
    %258 = arith.addf %253, %257 : vector<1x128xf32>
    %c7_213 = arith.constant 7 : index
    %c1_214 = arith.constant 1 : index
    %259 = memref.load %arg2[%c7_213, %c1_214] : memref<13x8xf32, #tpu.memory_space<smem>>
    %c3_215 = arith.constant 3 : index
    %c0_216 = arith.constant 0 : index
    %260 = vector.load %arg5[%c3_215, %c0_216] : memref<8x128xf32, #tpu.memory_space<vmem>>, vector<1x128xf32>
    %261 = vector.broadcast %259 : f32 to vector<1x128xf32>
    %262 = arith.mulf %261, %260 : vector<1x128xf32>
    %263 = arith.addf %258, %262 : vector<1x128xf32>
    %c8_217 = arith.constant 8 : index
    %c1_218 = arith.constant 1 : index
    %264 = memref.load %arg2[%c8_217, %c1_218] : memref<13x8xf32, #tpu.memory_space<smem>>
    %c4_219 = arith.constant 4 : index
    %c0_220 = arith.constant 0 : index
    %265 = vector.load %arg5[%c4_219, %c0_220] : memref<8x128xf32, #tpu.memory_space<vmem>>, vector<1x128xf32>
    %266 = vector.broadcast %264 : f32 to vector<1x128xf32>
    %267 = arith.mulf %266, %265 : vector<1x128xf32>
    %268 = arith.addf %263, %267 : vector<1x128xf32>
    %c9_221 = arith.constant 9 : index
    %c1_222 = arith.constant 1 : index
    %269 = memref.load %arg2[%c9_221, %c1_222] : memref<13x8xf32, #tpu.memory_space<smem>>
    %c5_223 = arith.constant 5 : index
    %c0_224 = arith.constant 0 : index
    %270 = vector.load %arg5[%c5_223, %c0_224] : memref<8x128xf32, #tpu.memory_space<vmem>>, vector<1x128xf32>
    %271 = vector.broadcast %269 : f32 to vector<1x128xf32>
    %272 = arith.mulf %271, %270 : vector<1x128xf32>
    %273 = arith.addf %268, %272 : vector<1x128xf32>
    %c10_225 = arith.constant 10 : index
    %c1_226 = arith.constant 1 : index
    %274 = memref.load %arg2[%c10_225, %c1_226] : memref<13x8xf32, #tpu.memory_space<smem>>
    %c6_227 = arith.constant 6 : index
    %c0_228 = arith.constant 0 : index
    %275 = vector.load %arg5[%c6_227, %c0_228] : memref<8x128xf32, #tpu.memory_space<vmem>>, vector<1x128xf32>
    %276 = vector.broadcast %274 : f32 to vector<1x128xf32>
    %277 = arith.mulf %276, %275 : vector<1x128xf32>
    %278 = arith.addf %273, %277 : vector<1x128xf32>
    %c11_229 = arith.constant 11 : index
    %c1_230 = arith.constant 1 : index
    %279 = memref.load %arg2[%c11_229, %c1_230] : memref<13x8xf32, #tpu.memory_space<smem>>
    %c7_231 = arith.constant 7 : index
    %c0_232 = arith.constant 0 : index
    %280 = vector.load %arg5[%c7_231, %c0_232] : memref<8x128xf32, #tpu.memory_space<vmem>>, vector<1x128xf32>
    %281 = vector.broadcast %279 : f32 to vector<1x128xf32>
    %282 = arith.mulf %281, %280 : vector<1x128xf32>
    %283 = arith.addf %278, %282 : vector<1x128xf32>
    %284 = math.tanh %283 : vector<1x128xf32>
    %c1_233 = arith.constant 1 : index
    %c0_234 = arith.constant 0 : index
    %285 = vector.load %arg6[%c1_233, %c0_234] : memref<8x128xf32, #tpu.memory_space<vmem>>, vector<1x128xf32>
    tpu.vector_store %arg6[%c1_233, %c0_234], %284 {strides = array<i32>} : memref<8x128xf32, #tpu.memory_space<vmem>>, vector<1x128xf32>,
    %c2_235 = arith.constant 2 : index
    %c0_236 = arith.constant 0 : index
    %286 = vector.load %arg4[%c2_235, %c0_236] : memref<8x128xf32, #tpu.memory_space<vmem>>, vector<1x128xf32>
    %c4_237 = arith.constant 4 : index
    %c2_238 = arith.constant 2 : index
    %287 = memref.load %arg2[%c4_237, %c2_238] : memref<13x8xf32, #tpu.memory_space<smem>>
    %c0_239 = arith.constant 0 : index
    %c0_240 = arith.constant 0 : index
    %288 = vector.load %arg5[%c0_239, %c0_240] : memref<8x128xf32, #tpu.memory_space<vmem>>, vector<1x128xf32>
    %289 = vector.broadcast %287 : f32 to vector<1x128xf32>
    %290 = arith.mulf %289, %288 : vector<1x128xf32>
    %291 = arith.addf %286, %290 : vector<1x128xf32>
    %c5_241 = arith.constant 5 : index
    %c2_242 = arith.constant 2 : index
    %292 = memref.load %arg2[%c5_241, %c2_242] : memref<13x8xf32, #tpu.memory_space<smem>>
    %c1_243 = arith.constant 1 : index
    %c0_244 = arith.constant 0 : index
    %293 = vector.load %arg5[%c1_243, %c0_244] : memref<8x128xf32, #tpu.memory_space<vmem>>, vector<1x128xf32>
    %294 = vector.broadcast %292 : f32 to vector<1x128xf32>
    %295 = arith.mulf %294, %293 : vector<1x128xf32>
    %296 = arith.addf %291, %295 : vector<1x128xf32>
    %c6_245 = arith.constant 6 : index
    %c2_246 = arith.constant 2 : index
    %297 = memref.load %arg2[%c6_245, %c2_246] : memref<13x8xf32, #tpu.memory_space<smem>>
    %c2_247 = arith.constant 2 : index
    %c0_248 = arith.constant 0 : index
    %298 = vector.load %arg5[%c2_247, %c0_248] : memref<8x128xf32, #tpu.memory_space<vmem>>, vector<1x128xf32>
    %299 = vector.broadcast %297 : f32 to vector<1x128xf32>
    %300 = arith.mulf %299, %298 : vector<1x128xf32>
    %301 = arith.addf %296, %300 : vector<1x128xf32>
    %c7_249 = arith.constant 7 : index
    %c2_250 = arith.constant 2 : index
    %302 = memref.load %arg2[%c7_249, %c2_250] : memref<13x8xf32, #tpu.memory_space<smem>>
    %c3_251 = arith.constant 3 : index
    %c0_252 = arith.constant 0 : index
    %303 = vector.load %arg5[%c3_251, %c0_252] : memref<8x128xf32, #tpu.memory_space<vmem>>, vector<1x128xf32>
    %304 = vector.broadcast %302 : f32 to vector<1x128xf32>
    %305 = arith.mulf %304, %303 : vector<1x128xf32>
    %306 = arith.addf %301, %305 : vector<1x128xf32>
    %c8_253 = arith.constant 8 : index
    %c2_254 = arith.constant 2 : index
    %307 = memref.load %arg2[%c8_253, %c2_254] : memref<13x8xf32, #tpu.memory_space<smem>>
    %c4_255 = arith.constant 4 : index
    %c0_256 = arith.constant 0 : index
    %308 = vector.load %arg5[%c4_255, %c0_256] : memref<8x128xf32, #tpu.memory_space<vmem>>, vector<1x128xf32>
    %309 = vector.broadcast %307 : f32 to vector<1x128xf32>
    %310 = arith.mulf %309, %308 : vector<1x128xf32>
    %311 = arith.addf %306, %310 : vector<1x128xf32>
    %c9_257 = arith.constant 9 : index
    %c2_258 = arith.constant 2 : index
    %312 = memref.load %arg2[%c9_257, %c2_258] : memref<13x8xf32, #tpu.memory_space<smem>>
    %c5_259 = arith.constant 5 : index
    %c0_260 = arith.constant 0 : index
    %313 = vector.load %arg5[%c5_259, %c0_260] : memref<8x128xf32, #tpu.memory_space<vmem>>, vector<1x128xf32>
    %314 = vector.broadcast %312 : f32 to vector<1x128xf32>
    %315 = arith.mulf %314, %313 : vector<1x128xf32>
    %316 = arith.addf %311, %315 : vector<1x128xf32>
    %c10_261 = arith.constant 10 : index
    %c2_262 = arith.constant 2 : index
    %317 = memref.load %arg2[%c10_261, %c2_262] : memref<13x8xf32, #tpu.memory_space<smem>>
    %c6_263 = arith.constant 6 : index
    %c0_264 = arith.constant 0 : index
    %318 = vector.load %arg5[%c6_263, %c0_264] : memref<8x128xf32, #tpu.memory_space<vmem>>, vector<1x128xf32>
    %319 = vector.broadcast %317 : f32 to vector<1x128xf32>
    %320 = arith.mulf %319, %318 : vector<1x128xf32>
    %321 = arith.addf %316, %320 : vector<1x128xf32>
    %c11_265 = arith.constant 11 : index
    %c2_266 = arith.constant 2 : index
    %322 = memref.load %arg2[%c11_265, %c2_266] : memref<13x8xf32, #tpu.memory_space<smem>>
    %c7_267 = arith.constant 7 : index
    %c0_268 = arith.constant 0 : index
    %323 = vector.load %arg5[%c7_267, %c0_268] : memref<8x128xf32, #tpu.memory_space<vmem>>, vector<1x128xf32>
    %324 = vector.broadcast %322 : f32 to vector<1x128xf32>
    %325 = arith.mulf %324, %323 : vector<1x128xf32>
    %326 = arith.addf %321, %325 : vector<1x128xf32>
    %327 = math.tanh %326 : vector<1x128xf32>
    %c2_269 = arith.constant 2 : index
    %c0_270 = arith.constant 0 : index
    %328 = vector.load %arg6[%c2_269, %c0_270] : memref<8x128xf32, #tpu.memory_space<vmem>>, vector<1x128xf32>
    tpu.vector_store %arg6[%c2_269, %c0_270], %327 {strides = array<i32>} : memref<8x128xf32, #tpu.memory_space<vmem>>, vector<1x128xf32>,
    %c3_271 = arith.constant 3 : index
    %c0_272 = arith.constant 0 : index
    %329 = vector.load %arg4[%c3_271, %c0_272] : memref<8x128xf32, #tpu.memory_space<vmem>>, vector<1x128xf32>
    %c4_273 = arith.constant 4 : index
    %c3_274 = arith.constant 3 : index
    %330 = memref.load %arg2[%c4_273, %c3_274] : memref<13x8xf32, #tpu.memory_space<smem>>
    %c0_275 = arith.constant 0 : index
    %c0_276 = arith.constant 0 : index
    %331 = vector.load %arg5[%c0_275, %c0_276] : memref<8x128xf32, #tpu.memory_space<vmem>>, vector<1x128xf32>
    %332 = vector.broadcast %330 : f32 to vector<1x128xf32>
    %333 = arith.mulf %332, %331 : vector<1x128xf32>
    %334 = arith.addf %329, %333 : vector<1x128xf32>
    %c5_277 = arith.constant 5 : index
    %c3_278 = arith.constant 3 : index
    %335 = memref.load %arg2[%c5_277, %c3_278] : memref<13x8xf32, #tpu.memory_space<smem>>
    %c1_279 = arith.constant 1 : index
    %c0_280 = arith.constant 0 : index
    %336 = vector.load %arg5[%c1_279, %c0_280] : memref<8x128xf32, #tpu.memory_space<vmem>>, vector<1x128xf32>
    %337 = vector.broadcast %335 : f32 to vector<1x128xf32>
    %338 = arith.mulf %337, %336 : vector<1x128xf32>
    %339 = arith.addf %334, %338 : vector<1x128xf32>
    %c6_281 = arith.constant 6 : index
    %c3_282 = arith.constant 3 : index
    %340 = memref.load %arg2[%c6_281, %c3_282] : memref<13x8xf32, #tpu.memory_space<smem>>
    %c2_283 = arith.constant 2 : index
    %c0_284 = arith.constant 0 : index
    %341 = vector.load %arg5[%c2_283, %c0_284] : memref<8x128xf32, #tpu.memory_space<vmem>>, vector<1x128xf32>
    %342 = vector.broadcast %340 : f32 to vector<1x128xf32>
    %343 = arith.mulf %342, %341 : vector<1x128xf32>
    %344 = arith.addf %339, %343 : vector<1x128xf32>
    %c7_285 = arith.constant 7 : index
    %c3_286 = arith.constant 3 : index
    %345 = memref.load %arg2[%c7_285, %c3_286] : memref<13x8xf32, #tpu.memory_space<smem>>
    %c3_287 = arith.constant 3 : index
    %c0_288 = arith.constant 0 : index
    %346 = vector.load %arg5[%c3_287, %c0_288] : memref<8x128xf32, #tpu.memory_space<vmem>>, vector<1x128xf32>
    %347 = vector.broadcast %345 : f32 to vector<1x128xf32>
    %348 = arith.mulf %347, %346 : vector<1x128xf32>
    %349 = arith.addf %344, %348 : vector<1x128xf32>
    %c8_289 = arith.constant 8 : index
    %c3_290 = arith.constant 3 : index
    %350 = memref.load %arg2[%c8_289, %c3_290] : memref<13x8xf32, #tpu.memory_space<smem>>
    %c4_291 = arith.constant 4 : index
    %c0_292 = arith.constant 0 : index
    %351 = vector.load %arg5[%c4_291, %c0_292] : memref<8x128xf32, #tpu.memory_space<vmem>>, vector<1x128xf32>
    %352 = vector.broadcast %350 : f32 to vector<1x128xf32>
    %353 = arith.mulf %352, %351 : vector<1x128xf32>
    %354 = arith.addf %349, %353 : vector<1x128xf32>
    %c9_293 = arith.constant 9 : index
    %c3_294 = arith.constant 3 : index
    %355 = memref.load %arg2[%c9_293, %c3_294] : memref<13x8xf32, #tpu.memory_space<smem>>
    %c5_295 = arith.constant 5 : index
    %c0_296 = arith.constant 0 : index
    %356 = vector.load %arg5[%c5_295, %c0_296] : memref<8x128xf32, #tpu.memory_space<vmem>>, vector<1x128xf32>
    %357 = vector.broadcast %355 : f32 to vector<1x128xf32>
    %358 = arith.mulf %357, %356 : vector<1x128xf32>
    %359 = arith.addf %354, %358 : vector<1x128xf32>
    %c10_297 = arith.constant 10 : index
    %c3_298 = arith.constant 3 : index
    %360 = memref.load %arg2[%c10_297, %c3_298] : memref<13x8xf32, #tpu.memory_space<smem>>
    %c6_299 = arith.constant 6 : index
    %c0_300 = arith.constant 0 : index
    %361 = vector.load %arg5[%c6_299, %c0_300] : memref<8x128xf32, #tpu.memory_space<vmem>>, vector<1x128xf32>
    %362 = vector.broadcast %360 : f32 to vector<1x128xf32>
    %363 = arith.mulf %362, %361 : vector<1x128xf32>
    %364 = arith.addf %359, %363 : vector<1x128xf32>
    %c11_301 = arith.constant 11 : index
    %c3_302 = arith.constant 3 : index
    %365 = memref.load %arg2[%c11_301, %c3_302] : memref<13x8xf32, #tpu.memory_space<smem>>
    %c7_303 = arith.constant 7 : index
    %c0_304 = arith.constant 0 : index
    %366 = vector.load %arg5[%c7_303, %c0_304] : memref<8x128xf32, #tpu.memory_space<vmem>>, vector<1x128xf32>
    %367 = vector.broadcast %365 : f32 to vector<1x128xf32>
    %368 = arith.mulf %367, %366 : vector<1x128xf32>
    %369 = arith.addf %364, %368 : vector<1x128xf32>
    %370 = math.tanh %369 : vector<1x128xf32>
    %c3_305 = arith.constant 3 : index
    %c0_306 = arith.constant 0 : index
    %371 = vector.load %arg6[%c3_305, %c0_306] : memref<8x128xf32, #tpu.memory_space<vmem>>, vector<1x128xf32>
    tpu.vector_store %arg6[%c3_305, %c0_306], %370 {strides = array<i32>} : memref<8x128xf32, #tpu.memory_space<vmem>>, vector<1x128xf32>,
    %c4_307 = arith.constant 4 : index
    %c0_308 = arith.constant 0 : index
    %372 = vector.load %arg4[%c4_307, %c0_308] : memref<8x128xf32, #tpu.memory_space<vmem>>, vector<1x128xf32>
    %c4_309 = arith.constant 4 : index
    %c4_310 = arith.constant 4 : index
    %373 = memref.load %arg2[%c4_309, %c4_310] : memref<13x8xf32, #tpu.memory_space<smem>>
    %c0_311 = arith.constant 0 : index
    %c0_312 = arith.constant 0 : index
    %374 = vector.load %arg5[%c0_311, %c0_312] : memref<8x128xf32, #tpu.memory_space<vmem>>, vector<1x128xf32>
    %375 = vector.broadcast %373 : f32 to vector<1x128xf32>
    %376 = arith.mulf %375, %374 : vector<1x128xf32>
    %377 = arith.addf %372, %376 : vector<1x128xf32>
    %c5_313 = arith.constant 5 : index
    %c4_314 = arith.constant 4 : index
    %378 = memref.load %arg2[%c5_313, %c4_314] : memref<13x8xf32, #tpu.memory_space<smem>>
    %c1_315 = arith.constant 1 : index
    %c0_316 = arith.constant 0 : index
    %379 = vector.load %arg5[%c1_315, %c0_316] : memref<8x128xf32, #tpu.memory_space<vmem>>, vector<1x128xf32>
    %380 = vector.broadcast %378 : f32 to vector<1x128xf32>
    %381 = arith.mulf %380, %379 : vector<1x128xf32>
    %382 = arith.addf %377, %381 : vector<1x128xf32>
    %c6_317 = arith.constant 6 : index
    %c4_318 = arith.constant 4 : index
    %383 = memref.load %arg2[%c6_317, %c4_318] : memref<13x8xf32, #tpu.memory_space<smem>>
    %c2_319 = arith.constant 2 : index
    %c0_320 = arith.constant 0 : index
    %384 = vector.load %arg5[%c2_319, %c0_320] : memref<8x128xf32, #tpu.memory_space<vmem>>, vector<1x128xf32>
    %385 = vector.broadcast %383 : f32 to vector<1x128xf32>
    %386 = arith.mulf %385, %384 : vector<1x128xf32>
    %387 = arith.addf %382, %386 : vector<1x128xf32>
    %c7_321 = arith.constant 7 : index
    %c4_322 = arith.constant 4 : index
    %388 = memref.load %arg2[%c7_321, %c4_322] : memref<13x8xf32, #tpu.memory_space<smem>>
    %c3_323 = arith.constant 3 : index
    %c0_324 = arith.constant 0 : index
    %389 = vector.load %arg5[%c3_323, %c0_324] : memref<8x128xf32, #tpu.memory_space<vmem>>, vector<1x128xf32>
    %390 = vector.broadcast %388 : f32 to vector<1x128xf32>
    %391 = arith.mulf %390, %389 : vector<1x128xf32>
    %392 = arith.addf %387, %391 : vector<1x128xf32>
    %c8_325 = arith.constant 8 : index
    %c4_326 = arith.constant 4 : index
    %393 = memref.load %arg2[%c8_325, %c4_326] : memref<13x8xf32, #tpu.memory_space<smem>>
    %c4_327 = arith.constant 4 : index
    %c0_328 = arith.constant 0 : index
    %394 = vector.load %arg5[%c4_327, %c0_328] : memref<8x128xf32, #tpu.memory_space<vmem>>, vector<1x128xf32>
    %395 = vector.broadcast %393 : f32 to vector<1x128xf32>
    %396 = arith.mulf %395, %394 : vector<1x128xf32>
    %397 = arith.addf %392, %396 : vector<1x128xf32>
    %c9_329 = arith.constant 9 : index
    %c4_330 = arith.constant 4 : index
    %398 = memref.load %arg2[%c9_329, %c4_330] : memref<13x8xf32, #tpu.memory_space<smem>>
    %c5_331 = arith.constant 5 : index
    %c0_332 = arith.constant 0 : index
    %399 = vector.load %arg5[%c5_331, %c0_332] : memref<8x128xf32, #tpu.memory_space<vmem>>, vector<1x128xf32>
    %400 = vector.broadcast %398 : f32 to vector<1x128xf32>
    %401 = arith.mulf %400, %399 : vector<1x128xf32>
    %402 = arith.addf %397, %401 : vector<1x128xf32>
    %c10_333 = arith.constant 10 : index
    %c4_334 = arith.constant 4 : index
    %403 = memref.load %arg2[%c10_333, %c4_334] : memref<13x8xf32, #tpu.memory_space<smem>>
    %c6_335 = arith.constant 6 : index
    %c0_336 = arith.constant 0 : index
    %404 = vector.load %arg5[%c6_335, %c0_336] : memref<8x128xf32, #tpu.memory_space<vmem>>, vector<1x128xf32>
    %405 = vector.broadcast %403 : f32 to vector<1x128xf32>
    %406 = arith.mulf %405, %404 : vector<1x128xf32>
    %407 = arith.addf %402, %406 : vector<1x128xf32>
    %c11_337 = arith.constant 11 : index
    %c4_338 = arith.constant 4 : index
    %408 = memref.load %arg2[%c11_337, %c4_338] : memref<13x8xf32, #tpu.memory_space<smem>>
    %c7_339 = arith.constant 7 : index
    %c0_340 = arith.constant 0 : index
    %409 = vector.load %arg5[%c7_339, %c0_340] : memref<8x128xf32, #tpu.memory_space<vmem>>, vector<1x128xf32>
    %410 = vector.broadcast %408 : f32 to vector<1x128xf32>
    %411 = arith.mulf %410, %409 : vector<1x128xf32>
    %412 = arith.addf %407, %411 : vector<1x128xf32>
    %413 = math.tanh %412 : vector<1x128xf32>
    %c4_341 = arith.constant 4 : index
    %c0_342 = arith.constant 0 : index
    %414 = vector.load %arg6[%c4_341, %c0_342] : memref<8x128xf32, #tpu.memory_space<vmem>>, vector<1x128xf32>
    tpu.vector_store %arg6[%c4_341, %c0_342], %413 {strides = array<i32>} : memref<8x128xf32, #tpu.memory_space<vmem>>, vector<1x128xf32>,
    %c5_343 = arith.constant 5 : index
    %c0_344 = arith.constant 0 : index
    %415 = vector.load %arg4[%c5_343, %c0_344] : memref<8x128xf32, #tpu.memory_space<vmem>>, vector<1x128xf32>
    %c4_345 = arith.constant 4 : index
    %c5_346 = arith.constant 5 : index
    %416 = memref.load %arg2[%c4_345, %c5_346] : memref<13x8xf32, #tpu.memory_space<smem>>
    %c0_347 = arith.constant 0 : index
    %c0_348 = arith.constant 0 : index
    %417 = vector.load %arg5[%c0_347, %c0_348] : memref<8x128xf32, #tpu.memory_space<vmem>>, vector<1x128xf32>
    %418 = vector.broadcast %416 : f32 to vector<1x128xf32>
    %419 = arith.mulf %418, %417 : vector<1x128xf32>
    %420 = arith.addf %415, %419 : vector<1x128xf32>
    %c5_349 = arith.constant 5 : index
    %c5_350 = arith.constant 5 : index
    %421 = memref.load %arg2[%c5_349, %c5_350] : memref<13x8xf32, #tpu.memory_space<smem>>
    %c1_351 = arith.constant 1 : index
    %c0_352 = arith.constant 0 : index
    %422 = vector.load %arg5[%c1_351, %c0_352] : memref<8x128xf32, #tpu.memory_space<vmem>>, vector<1x128xf32>
    %423 = vector.broadcast %421 : f32 to vector<1x128xf32>
    %424 = arith.mulf %423, %422 : vector<1x128xf32>
    %425 = arith.addf %420, %424 : vector<1x128xf32>
    %c6_353 = arith.constant 6 : index
    %c5_354 = arith.constant 5 : index
    %426 = memref.load %arg2[%c6_353, %c5_354] : memref<13x8xf32, #tpu.memory_space<smem>>
    %c2_355 = arith.constant 2 : index
    %c0_356 = arith.constant 0 : index
    %427 = vector.load %arg5[%c2_355, %c0_356] : memref<8x128xf32, #tpu.memory_space<vmem>>, vector<1x128xf32>
    %428 = vector.broadcast %426 : f32 to vector<1x128xf32>
    %429 = arith.mulf %428, %427 : vector<1x128xf32>
    %430 = arith.addf %425, %429 : vector<1x128xf32>
    %c7_357 = arith.constant 7 : index
    %c5_358 = arith.constant 5 : index
    %431 = memref.load %arg2[%c7_357, %c5_358] : memref<13x8xf32, #tpu.memory_space<smem>>
    %c3_359 = arith.constant 3 : index
    %c0_360 = arith.constant 0 : index
    %432 = vector.load %arg5[%c3_359, %c0_360] : memref<8x128xf32, #tpu.memory_space<vmem>>, vector<1x128xf32>
    %433 = vector.broadcast %431 : f32 to vector<1x128xf32>
    %434 = arith.mulf %433, %432 : vector<1x128xf32>
    %435 = arith.addf %430, %434 : vector<1x128xf32>
    %c8_361 = arith.constant 8 : index
    %c5_362 = arith.constant 5 : index
    %436 = memref.load %arg2[%c8_361, %c5_362] : memref<13x8xf32, #tpu.memory_space<smem>>
    %c4_363 = arith.constant 4 : index
    %c0_364 = arith.constant 0 : index
    %437 = vector.load %arg5[%c4_363, %c0_364] : memref<8x128xf32, #tpu.memory_space<vmem>>, vector<1x128xf32>
    %438 = vector.broadcast %436 : f32 to vector<1x128xf32>
    %439 = arith.mulf %438, %437 : vector<1x128xf32>
    %440 = arith.addf %435, %439 : vector<1x128xf32>
    %c9_365 = arith.constant 9 : index
    %c5_366 = arith.constant 5 : index
    %441 = memref.load %arg2[%c9_365, %c5_366] : memref<13x8xf32, #tpu.memory_space<smem>>
    %c5_367 = arith.constant 5 : index
    %c0_368 = arith.constant 0 : index
    %442 = vector.load %arg5[%c5_367, %c0_368] : memref<8x128xf32, #tpu.memory_space<vmem>>, vector<1x128xf32>
    %443 = vector.broadcast %441 : f32 to vector<1x128xf32>
    %444 = arith.mulf %443, %442 : vector<1x128xf32>
    %445 = arith.addf %440, %444 : vector<1x128xf32>
    %c10_369 = arith.constant 10 : index
    %c5_370 = arith.constant 5 : index
    %446 = memref.load %arg2[%c10_369, %c5_370] : memref<13x8xf32, #tpu.memory_space<smem>>
    %c6_371 = arith.constant 6 : index
    %c0_372 = arith.constant 0 : index
    %447 = vector.load %arg5[%c6_371, %c0_372] : memref<8x128xf32, #tpu.memory_space<vmem>>, vector<1x128xf32>
    %448 = vector.broadcast %446 : f32 to vector<1x128xf32>
    %449 = arith.mulf %448, %447 : vector<1x128xf32>
    %450 = arith.addf %445, %449 : vector<1x128xf32>
    %c11_373 = arith.constant 11 : index
    %c5_374 = arith.constant 5 : index
    %451 = memref.load %arg2[%c11_373, %c5_374] : memref<13x8xf32, #tpu.memory_space<smem>>
    %c7_375 = arith.constant 7 : index
    %c0_376 = arith.constant 0 : index
    %452 = vector.load %arg5[%c7_375, %c0_376] : memref<8x128xf32, #tpu.memory_space<vmem>>, vector<1x128xf32>
    %453 = vector.broadcast %451 : f32 to vector<1x128xf32>
    %454 = arith.mulf %453, %452 : vector<1x128xf32>
    %455 = arith.addf %450, %454 : vector<1x128xf32>
    %456 = math.tanh %455 : vector<1x128xf32>
    %c5_377 = arith.constant 5 : index
    %c0_378 = arith.constant 0 : index
    %457 = vector.load %arg6[%c5_377, %c0_378] : memref<8x128xf32, #tpu.memory_space<vmem>>, vector<1x128xf32>
    tpu.vector_store %arg6[%c5_377, %c0_378], %456 {strides = array<i32>} : memref<8x128xf32, #tpu.memory_space<vmem>>, vector<1x128xf32>,
    %c6_379 = arith.constant 6 : index
    %c0_380 = arith.constant 0 : index
    %458 = vector.load %arg4[%c6_379, %c0_380] : memref<8x128xf32, #tpu.memory_space<vmem>>, vector<1x128xf32>
    %c4_381 = arith.constant 4 : index
    %c6_382 = arith.constant 6 : index
    %459 = memref.load %arg2[%c4_381, %c6_382] : memref<13x8xf32, #tpu.memory_space<smem>>
    %c0_383 = arith.constant 0 : index
    %c0_384 = arith.constant 0 : index
    %460 = vector.load %arg5[%c0_383, %c0_384] : memref<8x128xf32, #tpu.memory_space<vmem>>, vector<1x128xf32>
    %461 = vector.broadcast %459 : f32 to vector<1x128xf32>
    %462 = arith.mulf %461, %460 : vector<1x128xf32>
    %463 = arith.addf %458, %462 : vector<1x128xf32>
    %c5_385 = arith.constant 5 : index
    %c6_386 = arith.constant 6 : index
    %464 = memref.load %arg2[%c5_385, %c6_386] : memref<13x8xf32, #tpu.memory_space<smem>>
    %c1_387 = arith.constant 1 : index
    %c0_388 = arith.constant 0 : index
    %465 = vector.load %arg5[%c1_387, %c0_388] : memref<8x128xf32, #tpu.memory_space<vmem>>, vector<1x128xf32>
    %466 = vector.broadcast %464 : f32 to vector<1x128xf32>
    %467 = arith.mulf %466, %465 : vector<1x128xf32>
    %468 = arith.addf %463, %467 : vector<1x128xf32>
    %c6_389 = arith.constant 6 : index
    %c6_390 = arith.constant 6 : index
    %469 = memref.load %arg2[%c6_389, %c6_390] : memref<13x8xf32, #tpu.memory_space<smem>>
    %c2_391 = arith.constant 2 : index
    %c0_392 = arith.constant 0 : index
    %470 = vector.load %arg5[%c2_391, %c0_392] : memref<8x128xf32, #tpu.memory_space<vmem>>, vector<1x128xf32>
    %471 = vector.broadcast %469 : f32 to vector<1x128xf32>
    %472 = arith.mulf %471, %470 : vector<1x128xf32>
    %473 = arith.addf %468, %472 : vector<1x128xf32>
    %c7_393 = arith.constant 7 : index
    %c6_394 = arith.constant 6 : index
    %474 = memref.load %arg2[%c7_393, %c6_394] : memref<13x8xf32, #tpu.memory_space<smem>>
    %c3_395 = arith.constant 3 : index
    %c0_396 = arith.constant 0 : index
    %475 = vector.load %arg5[%c3_395, %c0_396] : memref<8x128xf32, #tpu.memory_space<vmem>>, vector<1x128xf32>
    %476 = vector.broadcast %474 : f32 to vector<1x128xf32>
    %477 = arith.mulf %476, %475 : vector<1x128xf32>
    %478 = arith.addf %473, %477 : vector<1x128xf32>
    %c8_397 = arith.constant 8 : index
    %c6_398 = arith.constant 6 : index
    %479 = memref.load %arg2[%c8_397, %c6_398] : memref<13x8xf32, #tpu.memory_space<smem>>
    %c4_399 = arith.constant 4 : index
    %c0_400 = arith.constant 0 : index
    %480 = vector.load %arg5[%c4_399, %c0_400] : memref<8x128xf32, #tpu.memory_space<vmem>>, vector<1x128xf32>
    %481 = vector.broadcast %479 : f32 to vector<1x128xf32>
    %482 = arith.mulf %481, %480 : vector<1x128xf32>
    %483 = arith.addf %478, %482 : vector<1x128xf32>
    %c9_401 = arith.constant 9 : index
    %c6_402 = arith.constant 6 : index
    %484 = memref.load %arg2[%c9_401, %c6_402] : memref<13x8xf32, #tpu.memory_space<smem>>
    %c5_403 = arith.constant 5 : index
    %c0_404 = arith.constant 0 : index
    %485 = vector.load %arg5[%c5_403, %c0_404] : memref<8x128xf32, #tpu.memory_space<vmem>>, vector<1x128xf32>
    %486 = vector.broadcast %484 : f32 to vector<1x128xf32>
    %487 = arith.mulf %486, %485 : vector<1x128xf32>
    %488 = arith.addf %483, %487 : vector<1x128xf32>
    %c10_405 = arith.constant 10 : index
    %c6_406 = arith.constant 6 : index
    %489 = memref.load %arg2[%c10_405, %c6_406] : memref<13x8xf32, #tpu.memory_space<smem>>
    %c6_407 = arith.constant 6 : index
    %c0_408 = arith.constant 0 : index
    %490 = vector.load %arg5[%c6_407, %c0_408] : memref<8x128xf32, #tpu.memory_space<vmem>>, vector<1x128xf32>
    %491 = vector.broadcast %489 : f32 to vector<1x128xf32>
    %492 = arith.mulf %491, %490 : vector<1x128xf32>
    %493 = arith.addf %488, %492 : vector<1x128xf32>
    %c11_409 = arith.constant 11 : index
    %c6_410 = arith.constant 6 : index
    %494 = memref.load %arg2[%c11_409, %c6_410] : memref<13x8xf32, #tpu.memory_space<smem>>
    %c7_411 = arith.constant 7 : index
    %c0_412 = arith.constant 0 : index
    %495 = vector.load %arg5[%c7_411, %c0_412] : memref<8x128xf32, #tpu.memory_space<vmem>>, vector<1x128xf32>
    %496 = vector.broadcast %494 : f32 to vector<1x128xf32>
    %497 = arith.mulf %496, %495 : vector<1x128xf32>
    %498 = arith.addf %493, %497 : vector<1x128xf32>
    %499 = math.tanh %498 : vector<1x128xf32>
    %c6_413 = arith.constant 6 : index
    %c0_414 = arith.constant 0 : index
    %500 = vector.load %arg6[%c6_413, %c0_414] : memref<8x128xf32, #tpu.memory_space<vmem>>, vector<1x128xf32>
    tpu.vector_store %arg6[%c6_413, %c0_414], %499 {strides = array<i32>} : memref<8x128xf32, #tpu.memory_space<vmem>>, vector<1x128xf32>,
    %c7_415 = arith.constant 7 : index
    %c0_416 = arith.constant 0 : index
    %501 = vector.load %arg4[%c7_415, %c0_416] : memref<8x128xf32, #tpu.memory_space<vmem>>, vector<1x128xf32>
    %c4_417 = arith.constant 4 : index
    %c7_418 = arith.constant 7 : index
    %502 = memref.load %arg2[%c4_417, %c7_418] : memref<13x8xf32, #tpu.memory_space<smem>>
    %c0_419 = arith.constant 0 : index
    %c0_420 = arith.constant 0 : index
    %503 = vector.load %arg5[%c0_419, %c0_420] : memref<8x128xf32, #tpu.memory_space<vmem>>, vector<1x128xf32>
    %504 = vector.broadcast %502 : f32 to vector<1x128xf32>
    %505 = arith.mulf %504, %503 : vector<1x128xf32>
    %506 = arith.addf %501, %505 : vector<1x128xf32>
    %c5_421 = arith.constant 5 : index
    %c7_422 = arith.constant 7 : index
    %507 = memref.load %arg2[%c5_421, %c7_422] : memref<13x8xf32, #tpu.memory_space<smem>>
    %c1_423 = arith.constant 1 : index
    %c0_424 = arith.constant 0 : index
    %508 = vector.load %arg5[%c1_423, %c0_424] : memref<8x128xf32, #tpu.memory_space<vmem>>, vector<1x128xf32>
    %509 = vector.broadcast %507 : f32 to vector<1x128xf32>
    %510 = arith.mulf %509, %508 : vector<1x128xf32>
    %511 = arith.addf %506, %510 : vector<1x128xf32>
    %c6_425 = arith.constant 6 : index
    %c7_426 = arith.constant 7 : index
    %512 = memref.load %arg2[%c6_425, %c7_426] : memref<13x8xf32, #tpu.memory_space<smem>>
    %c2_427 = arith.constant 2 : index
    %c0_428 = arith.constant 0 : index
    %513 = vector.load %arg5[%c2_427, %c0_428] : memref<8x128xf32, #tpu.memory_space<vmem>>, vector<1x128xf32>
    %514 = vector.broadcast %512 : f32 to vector<1x128xf32>
    %515 = arith.mulf %514, %513 : vector<1x128xf32>
    %516 = arith.addf %511, %515 : vector<1x128xf32>
    %c7_429 = arith.constant 7 : index
    %c7_430 = arith.constant 7 : index
    %517 = memref.load %arg2[%c7_429, %c7_430] : memref<13x8xf32, #tpu.memory_space<smem>>
    %c3_431 = arith.constant 3 : index
    %c0_432 = arith.constant 0 : index
    %518 = vector.load %arg5[%c3_431, %c0_432] : memref<8x128xf32, #tpu.memory_space<vmem>>, vector<1x128xf32>
    %519 = vector.broadcast %517 : f32 to vector<1x128xf32>
    %520 = arith.mulf %519, %518 : vector<1x128xf32>
    %521 = arith.addf %516, %520 : vector<1x128xf32>
    %c8_433 = arith.constant 8 : index
    %c7_434 = arith.constant 7 : index
    %522 = memref.load %arg2[%c8_433, %c7_434] : memref<13x8xf32, #tpu.memory_space<smem>>
    %c4_435 = arith.constant 4 : index
    %c0_436 = arith.constant 0 : index
    %523 = vector.load %arg5[%c4_435, %c0_436] : memref<8x128xf32, #tpu.memory_space<vmem>>, vector<1x128xf32>
    %524 = vector.broadcast %522 : f32 to vector<1x128xf32>
    %525 = arith.mulf %524, %523 : vector<1x128xf32>
    %526 = arith.addf %521, %525 : vector<1x128xf32>
    %c9_437 = arith.constant 9 : index
    %c7_438 = arith.constant 7 : index
    %527 = memref.load %arg2[%c9_437, %c7_438] : memref<13x8xf32, #tpu.memory_space<smem>>
    %c5_439 = arith.constant 5 : index
    %c0_440 = arith.constant 0 : index
    %528 = vector.load %arg5[%c5_439, %c0_440] : memref<8x128xf32, #tpu.memory_space<vmem>>, vector<1x128xf32>
    %529 = vector.broadcast %527 : f32 to vector<1x128xf32>
    %530 = arith.mulf %529, %528 : vector<1x128xf32>
    %531 = arith.addf %526, %530 : vector<1x128xf32>
    %c10_441 = arith.constant 10 : index
    %c7_442 = arith.constant 7 : index
    %532 = memref.load %arg2[%c10_441, %c7_442] : memref<13x8xf32, #tpu.memory_space<smem>>
    %c6_443 = arith.constant 6 : index
    %c0_444 = arith.constant 0 : index
    %533 = vector.load %arg5[%c6_443, %c0_444] : memref<8x128xf32, #tpu.memory_space<vmem>>, vector<1x128xf32>
    %534 = vector.broadcast %532 : f32 to vector<1x128xf32>
    %535 = arith.mulf %534, %533 : vector<1x128xf32>
    %536 = arith.addf %531, %535 : vector<1x128xf32>
    %c11_445 = arith.constant 11 : index
    %c7_446 = arith.constant 7 : index
    %537 = memref.load %arg2[%c11_445, %c7_446] : memref<13x8xf32, #tpu.memory_space<smem>>
    %c7_447 = arith.constant 7 : index
    %c0_448 = arith.constant 0 : index
    %538 = vector.load %arg5[%c7_447, %c0_448] : memref<8x128xf32, #tpu.memory_space<vmem>>, vector<1x128xf32>
    %539 = vector.broadcast %537 : f32 to vector<1x128xf32>
    %540 = arith.mulf %539, %538 : vector<1x128xf32>
    %541 = arith.addf %536, %540 : vector<1x128xf32>
    %542 = math.tanh %541 : vector<1x128xf32>
    %c7_449 = arith.constant 7 : index
    %c0_450 = arith.constant 0 : index
    %543 = vector.load %arg6[%c7_449, %c0_450] : memref<8x128xf32, #tpu.memory_space<vmem>>, vector<1x128xf32>
    tpu.vector_store %arg6[%c7_449, %c0_450], %542 {strides = array<i32>} : memref<8x128xf32, #tpu.memory_space<vmem>>, vector<1x128xf32>,
    %c0_451 = arith.constant 0 : index
    %c0_452 = arith.constant 0 : index
    %544 = vector.load %arg4[%c0_451, %c0_452] : memref<8x128xf32, #tpu.memory_space<vmem>>, vector<1x128xf32>
    %c4_453 = arith.constant 4 : index
    %c0_454 = arith.constant 0 : index
    %545 = memref.load %arg2[%c4_453, %c0_454] : memref<13x8xf32, #tpu.memory_space<smem>>
    %c0_455 = arith.constant 0 : index
    %c0_456 = arith.constant 0 : index
    %546 = vector.load %arg6[%c0_455, %c0_456] : memref<8x128xf32, #tpu.memory_space<vmem>>, vector<1x128xf32>
    %547 = vector.broadcast %545 : f32 to vector<1x128xf32>
    %548 = arith.mulf %547, %546 : vector<1x128xf32>
    %549 = arith.addf %544, %548 : vector<1x128xf32>
    %c5_457 = arith.constant 5 : index
    %c0_458 = arith.constant 0 : index
    %550 = memref.load %arg2[%c5_457, %c0_458] : memref<13x8xf32, #tpu.memory_space<smem>>
    %c1_459 = arith.constant 1 : index
    %c0_460 = arith.constant 0 : index
    %551 = vector.load %arg6[%c1_459, %c0_460] : memref<8x128xf32, #tpu.memory_space<vmem>>, vector<1x128xf32>
    %552 = vector.broadcast %550 : f32 to vector<1x128xf32>
    %553 = arith.mulf %552, %551 : vector<1x128xf32>
    %554 = arith.addf %549, %553 : vector<1x128xf32>
    %c6_461 = arith.constant 6 : index
    %c0_462 = arith.constant 0 : index
    %555 = memref.load %arg2[%c6_461, %c0_462] : memref<13x8xf32, #tpu.memory_space<smem>>
    %c2_463 = arith.constant 2 : index
    %c0_464 = arith.constant 0 : index
    %556 = vector.load %arg6[%c2_463, %c0_464] : memref<8x128xf32, #tpu.memory_space<vmem>>, vector<1x128xf32>
    %557 = vector.broadcast %555 : f32 to vector<1x128xf32>
    %558 = arith.mulf %557, %556 : vector<1x128xf32>
    %559 = arith.addf %554, %558 : vector<1x128xf32>
    %c7_465 = arith.constant 7 : index
    %c0_466 = arith.constant 0 : index
    %560 = memref.load %arg2[%c7_465, %c0_466] : memref<13x8xf32, #tpu.memory_space<smem>>
    %c3_467 = arith.constant 3 : index
    %c0_468 = arith.constant 0 : index
    %561 = vector.load %arg6[%c3_467, %c0_468] : memref<8x128xf32, #tpu.memory_space<vmem>>, vector<1x128xf32>
    %562 = vector.broadcast %560 : f32 to vector<1x128xf32>
    %563 = arith.mulf %562, %561 : vector<1x128xf32>
    %564 = arith.addf %559, %563 : vector<1x128xf32>
    %c8_469 = arith.constant 8 : index
    %c0_470 = arith.constant 0 : index
    %565 = memref.load %arg2[%c8_469, %c0_470] : memref<13x8xf32, #tpu.memory_space<smem>>
    %c4_471 = arith.constant 4 : index
    %c0_472 = arith.constant 0 : index
    %566 = vector.load %arg6[%c4_471, %c0_472] : memref<8x128xf32, #tpu.memory_space<vmem>>, vector<1x128xf32>
    %567 = vector.broadcast %565 : f32 to vector<1x128xf32>
    %568 = arith.mulf %567, %566 : vector<1x128xf32>
    %569 = arith.addf %564, %568 : vector<1x128xf32>
    %c9_473 = arith.constant 9 : index
    %c0_474 = arith.constant 0 : index
    %570 = memref.load %arg2[%c9_473, %c0_474] : memref<13x8xf32, #tpu.memory_space<smem>>
    %c5_475 = arith.constant 5 : index
    %c0_476 = arith.constant 0 : index
    %571 = vector.load %arg6[%c5_475, %c0_476] : memref<8x128xf32, #tpu.memory_space<vmem>>, vector<1x128xf32>
    %572 = vector.broadcast %570 : f32 to vector<1x128xf32>
    %573 = arith.mulf %572, %571 : vector<1x128xf32>
    %574 = arith.addf %569, %573 : vector<1x128xf32>
    %c10_477 = arith.constant 10 : index
    %c0_478 = arith.constant 0 : index
    %575 = memref.load %arg2[%c10_477, %c0_478] : memref<13x8xf32, #tpu.memory_space<smem>>
    %c6_479 = arith.constant 6 : index
    %c0_480 = arith.constant 0 : index
    %576 = vector.load %arg6[%c6_479, %c0_480] : memref<8x128xf32, #tpu.memory_space<vmem>>, vector<1x128xf32>
    %577 = vector.broadcast %575 : f32 to vector<1x128xf32>
    %578 = arith.mulf %577, %576 : vector<1x128xf32>
    %579 = arith.addf %574, %578 : vector<1x128xf32>
    %c11_481 = arith.constant 11 : index
    %c0_482 = arith.constant 0 : index
    %580 = memref.load %arg2[%c11_481, %c0_482] : memref<13x8xf32, #tpu.memory_space<smem>>
    %c7_483 = arith.constant 7 : index
    %c0_484 = arith.constant 0 : index
    %581 = vector.load %arg6[%c7_483, %c0_484] : memref<8x128xf32, #tpu.memory_space<vmem>>, vector<1x128xf32>
    %582 = vector.broadcast %580 : f32 to vector<1x128xf32>
    %583 = arith.mulf %582, %581 : vector<1x128xf32>
    %584 = arith.addf %579, %583 : vector<1x128xf32>
    %585 = math.tanh %584 : vector<1x128xf32>
    %c0_485 = arith.constant 0 : index
    %c0_486 = arith.constant 0 : index
    %586 = vector.load %arg3[%c0_485, %c0_486] : memref<3x128xf32, #tpu.memory_space<vmem>>, vector<1x128xf32>
    tpu.vector_store %arg3[%c0_485, %c0_486], %585 {strides = array<i32>} : memref<3x128xf32, #tpu.memory_space<vmem>>, vector<1x128xf32>,
    %c1_487 = arith.constant 1 : index
    %c0_488 = arith.constant 0 : index
    %587 = vector.load %arg4[%c1_487, %c0_488] : memref<8x128xf32, #tpu.memory_space<vmem>>, vector<1x128xf32>
    %c4_489 = arith.constant 4 : index
    %c1_490 = arith.constant 1 : index
    %588 = memref.load %arg2[%c4_489, %c1_490] : memref<13x8xf32, #tpu.memory_space<smem>>
    %c0_491 = arith.constant 0 : index
    %c0_492 = arith.constant 0 : index
    %589 = vector.load %arg6[%c0_491, %c0_492] : memref<8x128xf32, #tpu.memory_space<vmem>>, vector<1x128xf32>
    %590 = vector.broadcast %588 : f32 to vector<1x128xf32>
    %591 = arith.mulf %590, %589 : vector<1x128xf32>
    %592 = arith.addf %587, %591 : vector<1x128xf32>
    %c5_493 = arith.constant 5 : index
    %c1_494 = arith.constant 1 : index
    %593 = memref.load %arg2[%c5_493, %c1_494] : memref<13x8xf32, #tpu.memory_space<smem>>
    %c1_495 = arith.constant 1 : index
    %c0_496 = arith.constant 0 : index
    %594 = vector.load %arg6[%c1_495, %c0_496] : memref<8x128xf32, #tpu.memory_space<vmem>>, vector<1x128xf32>
    %595 = vector.broadcast %593 : f32 to vector<1x128xf32>
    %596 = arith.mulf %595, %594 : vector<1x128xf32>
    %597 = arith.addf %592, %596 : vector<1x128xf32>
    %c6_497 = arith.constant 6 : index
    %c1_498 = arith.constant 1 : index
    %598 = memref.load %arg2[%c6_497, %c1_498] : memref<13x8xf32, #tpu.memory_space<smem>>
    %c2_499 = arith.constant 2 : index
    %c0_500 = arith.constant 0 : index
    %599 = vector.load %arg6[%c2_499, %c0_500] : memref<8x128xf32, #tpu.memory_space<vmem>>, vector<1x128xf32>
    %600 = vector.broadcast %598 : f32 to vector<1x128xf32>
    %601 = arith.mulf %600, %599 : vector<1x128xf32>
    %602 = arith.addf %597, %601 : vector<1x128xf32>
    %c7_501 = arith.constant 7 : index
    %c1_502 = arith.constant 1 : index
    %603 = memref.load %arg2[%c7_501, %c1_502] : memref<13x8xf32, #tpu.memory_space<smem>>
    %c3_503 = arith.constant 3 : index
    %c0_504 = arith.constant 0 : index
    %604 = vector.load %arg6[%c3_503, %c0_504] : memref<8x128xf32, #tpu.memory_space<vmem>>, vector<1x128xf32>
    %605 = vector.broadcast %603 : f32 to vector<1x128xf32>
    %606 = arith.mulf %605, %604 : vector<1x128xf32>
    %607 = arith.addf %602, %606 : vector<1x128xf32>
    %c8_505 = arith.constant 8 : index
    %c1_506 = arith.constant 1 : index
    %608 = memref.load %arg2[%c8_505, %c1_506] : memref<13x8xf32, #tpu.memory_space<smem>>
    %c4_507 = arith.constant 4 : index
    %c0_508 = arith.constant 0 : index
    %609 = vector.load %arg6[%c4_507, %c0_508] : memref<8x128xf32, #tpu.memory_space<vmem>>, vector<1x128xf32>
    %610 = vector.broadcast %608 : f32 to vector<1x128xf32>
    %611 = arith.mulf %610, %609 : vector<1x128xf32>
    %612 = arith.addf %607, %611 : vector<1x128xf32>
    %c9_509 = arith.constant 9 : index
    %c1_510 = arith.constant 1 : index
    %613 = memref.load %arg2[%c9_509, %c1_510] : memref<13x8xf32, #tpu.memory_space<smem>>
    %c5_511 = arith.constant 5 : index
    %c0_512 = arith.constant 0 : index
    %614 = vector.load %arg6[%c5_511, %c0_512] : memref<8x128xf32, #tpu.memory_space<vmem>>, vector<1x128xf32>
    %615 = vector.broadcast %613 : f32 to vector<1x128xf32>
    %616 = arith.mulf %615, %614 : vector<1x128xf32>
    %617 = arith.addf %612, %616 : vector<1x128xf32>
    %c10_513 = arith.constant 10 : index
    %c1_514 = arith.constant 1 : index
    %618 = memref.load %arg2[%c10_513, %c1_514] : memref<13x8xf32, #tpu.memory_space<smem>>
    %c6_515 = arith.constant 6 : index
    %c0_516 = arith.constant 0 : index
    %619 = vector.load %arg6[%c6_515, %c0_516] : memref<8x128xf32, #tpu.memory_space<vmem>>, vector<1x128xf32>
    %620 = vector.broadcast %618 : f32 to vector<1x128xf32>
    %621 = arith.mulf %620, %619 : vector<1x128xf32>
    %622 = arith.addf %617, %621 : vector<1x128xf32>
    %c11_517 = arith.constant 11 : index
    %c1_518 = arith.constant 1 : index
    %623 = memref.load %arg2[%c11_517, %c1_518] : memref<13x8xf32, #tpu.memory_space<smem>>
    %c7_519 = arith.constant 7 : index
    %c0_520 = arith.constant 0 : index
    %624 = vector.load %arg6[%c7_519, %c0_520] : memref<8x128xf32, #tpu.memory_space<vmem>>, vector<1x128xf32>
    %625 = vector.broadcast %623 : f32 to vector<1x128xf32>
    %626 = arith.mulf %625, %624 : vector<1x128xf32>
    %627 = arith.addf %622, %626 : vector<1x128xf32>
    %628 = math.tanh %627 : vector<1x128xf32>
    %c1_521 = arith.constant 1 : index
    %c0_522 = arith.constant 0 : index
    %629 = vector.load %arg3[%c1_521, %c0_522] : memref<3x128xf32, #tpu.memory_space<vmem>>, vector<1x128xf32>
    tpu.vector_store %arg3[%c1_521, %c0_522], %628 {strides = array<i32>} : memref<3x128xf32, #tpu.memory_space<vmem>>, vector<1x128xf32>,
    %c2_523 = arith.constant 2 : index
    %c0_524 = arith.constant 0 : index
    %630 = vector.load %arg4[%c2_523, %c0_524] : memref<8x128xf32, #tpu.memory_space<vmem>>, vector<1x128xf32>
    %c4_525 = arith.constant 4 : index
    %c2_526 = arith.constant 2 : index
    %631 = memref.load %arg2[%c4_525, %c2_526] : memref<13x8xf32, #tpu.memory_space<smem>>
    %c0_527 = arith.constant 0 : index
    %c0_528 = arith.constant 0 : index
    %632 = vector.load %arg6[%c0_527, %c0_528] : memref<8x128xf32, #tpu.memory_space<vmem>>, vector<1x128xf32>
    %633 = vector.broadcast %631 : f32 to vector<1x128xf32>
    %634 = arith.mulf %633, %632 : vector<1x128xf32>
    %635 = arith.addf %630, %634 : vector<1x128xf32>
    %c5_529 = arith.constant 5 : index
    %c2_530 = arith.constant 2 : index
    %636 = memref.load %arg2[%c5_529, %c2_530] : memref<13x8xf32, #tpu.memory_space<smem>>
    %c1_531 = arith.constant 1 : index
    %c0_532 = arith.constant 0 : index
    %637 = vector.load %arg6[%c1_531, %c0_532] : memref<8x128xf32, #tpu.memory_space<vmem>>, vector<1x128xf32>
    %638 = vector.broadcast %636 : f32 to vector<1x128xf32>
    %639 = arith.mulf %638, %637 : vector<1x128xf32>
    %640 = arith.addf %635, %639 : vector<1x128xf32>
    %c6_533 = arith.constant 6 : index
    %c2_534 = arith.constant 2 : index
    %641 = memref.load %arg2[%c6_533, %c2_534] : memref<13x8xf32, #tpu.memory_space<smem>>
    %c2_535 = arith.constant 2 : index
    %c0_536 = arith.constant 0 : index
    %642 = vector.load %arg6[%c2_535, %c0_536] : memref<8x128xf32, #tpu.memory_space<vmem>>, vector<1x128xf32>
    %643 = vector.broadcast %641 : f32 to vector<1x128xf32>
    %644 = arith.mulf %643, %642 : vector<1x128xf32>
    %645 = arith.addf %640, %644 : vector<1x128xf32>
    %c7_537 = arith.constant 7 : index
    %c2_538 = arith.constant 2 : index
    %646 = memref.load %arg2[%c7_537, %c2_538] : memref<13x8xf32, #tpu.memory_space<smem>>
    %c3_539 = arith.constant 3 : index
    %c0_540 = arith.constant 0 : index
    %647 = vector.load %arg6[%c3_539, %c0_540] : memref<8x128xf32, #tpu.memory_space<vmem>>, vector<1x128xf32>
    %648 = vector.broadcast %646 : f32 to vector<1x128xf32>
    %649 = arith.mulf %648, %647 : vector<1x128xf32>
    %650 = arith.addf %645, %649 : vector<1x128xf32>
    %c8_541 = arith.constant 8 : index
    %c2_542 = arith.constant 2 : index
    %651 = memref.load %arg2[%c8_541, %c2_542] : memref<13x8xf32, #tpu.memory_space<smem>>
    %c4_543 = arith.constant 4 : index
    %c0_544 = arith.constant 0 : index
    %652 = vector.load %arg6[%c4_543, %c0_544] : memref<8x128xf32, #tpu.memory_space<vmem>>, vector<1x128xf32>
    %653 = vector.broadcast %651 : f32 to vector<1x128xf32>
    %654 = arith.mulf %653, %652 : vector<1x128xf32>
    %655 = arith.addf %650, %654 : vector<1x128xf32>
    %c9_545 = arith.constant 9 : index
    %c2_546 = arith.constant 2 : index
    %656 = memref.load %arg2[%c9_545, %c2_546] : memref<13x8xf32, #tpu.memory_space<smem>>
    %c5_547 = arith.constant 5 : index
    %c0_548 = arith.constant 0 : index
    %657 = vector.load %arg6[%c5_547, %c0_548] : memref<8x128xf32, #tpu.memory_space<vmem>>, vector<1x128xf32>
    %658 = vector.broadcast %656 : f32 to vector<1x128xf32>
    %659 = arith.mulf %658, %657 : vector<1x128xf32>
    %660 = arith.addf %655, %659 : vector<1x128xf32>
    %c10_549 = arith.constant 10 : index
    %c2_550 = arith.constant 2 : index
    %661 = memref.load %arg2[%c10_549, %c2_550] : memref<13x8xf32, #tpu.memory_space<smem>>
    %c6_551 = arith.constant 6 : index
    %c0_552 = arith.constant 0 : index
    %662 = vector.load %arg6[%c6_551, %c0_552] : memref<8x128xf32, #tpu.memory_space<vmem>>, vector<1x128xf32>
    %663 = vector.broadcast %661 : f32 to vector<1x128xf32>
    %664 = arith.mulf %663, %662 : vector<1x128xf32>
    %665 = arith.addf %660, %664 : vector<1x128xf32>
    %c11_553 = arith.constant 11 : index
    %c2_554 = arith.constant 2 : index
    %666 = memref.load %arg2[%c11_553, %c2_554] : memref<13x8xf32, #tpu.memory_space<smem>>
    %c7_555 = arith.constant 7 : index
    %c0_556 = arith.constant 0 : index
    %667 = vector.load %arg6[%c7_555, %c0_556] : memref<8x128xf32, #tpu.memory_space<vmem>>, vector<1x128xf32>
    %668 = vector.broadcast %666 : f32 to vector<1x128xf32>
    %669 = arith.mulf %668, %667 : vector<1x128xf32>
    %670 = arith.addf %665, %669 : vector<1x128xf32>
    %671 = math.tanh %670 : vector<1x128xf32>
    %c2_557 = arith.constant 2 : index
    %c0_558 = arith.constant 0 : index
    %672 = vector.load %arg3[%c2_557, %c0_558] : memref<3x128xf32, #tpu.memory_space<vmem>>, vector<1x128xf32>
    tpu.vector_store %arg3[%c2_557, %c0_558], %671 {strides = array<i32>} : memref<3x128xf32, #tpu.memory_space<vmem>>, vector<1x128xf32>,
    return
  }
  func.func @transform_0(%arg0: i32) -> (i32, i32) {
    %c0_i32 = arith.constant 0 : i32
    %c0_i32_0 = arith.constant 0 : i32
    return %c0_i32, %arg0 : i32, i32
  }
  func.func @transform_1(%arg0: i32) -> (i32, i32) {
    %c0_i32 = arith.constant 0 : i32
    %c0_i32_0 = arith.constant 0 : i32
    %c0_i32_1 = arith.constant 0 : i32
    return %c0_i32, %c0_i32_0 : i32, i32
  }
  func.func @transform_2(%arg0: i32) -> (i32, i32) {
    %c0_i32 = arith.constant 0 : i32
    %c0_i32_0 = arith.constant 0 : i32
    return %c0_i32, %arg0 : i32, i32
  }
}

</mosaic_0001>

<llo_original>
// kernel: tpu_custom_call.1
$region0: #{tpu_custom_call.1}
  #allocation0 [shape = 'u32[]', space=smem, size = 0x4, offset = 0x4, fixed_abs, tag = 'smem constant byte address 0x4 - core index']
  #allocation1 [shape = 'u32[144,128]{1,0:T(1,128)}', space=vmem, size = 0x12000, scoped, tag = 'internal scratch']
  #allocation2 [shape = 'f32[8,128]{1,0:T(8,128)}', space=vmem, size = 0x1000, scoped, tag = 'scratch operand']
  #allocation3 [shape = 'f32[8,128]{1,0:T(8,128)}', space=vmem, size = 0x1000, scoped, tag = 'scratch operand']
  #allocation4 [shape = 'f32[8,128]{1,0:T(8,128)}', space=vmem, size = 0x1000, scoped, tag = 'scratch operand']
  %s0 = inlined_call_operand.vmem [shape: f32[4,256], index: 0, kind: input, shape index: {}]
  %s1 = inlined_call_operand.vmem [shape: f32[13,8], index: 1, kind: input, shape index: {}]
  %s2 = inlined_call_operand.hbm [shape: f32[3,256], index: 2, kind: output, shape index: {}]
  %s3 = sld [smem:[#allocation0]]
  $region45: #{tpu_custom_call.1} parent=0
    _
  %s5 = ssub.s32 1, %s3
  %s6 = scalar_select 0, %s5, %s3
  $region1: #{tpu_custom_call.1} parent=0
    #allocation5 [shape = 'u8[8192]{0}', space=smem, size = 0x2000, scoped, tag = 'input window, operand 1, single buffered']
    #allocation6 [shape = 's32[2]{0}', space=sflag, size = 0x8, scoped, tag = 'scoped memory for tpu_custom_call.1']
    #allocation7 [shape = 's32[2]{0}', space=sflag, size = 0x8, scoped, tag = 'scoped memory for tpu_custom_call.1']
    #allocation8 [shape = 'u8[4096]{0}', space=vmem, size = 0x1000, scoped, tag = 'output window, operand 0']
    %7 = vsyncpa [#allocation7], 0
    %8 = vsyncpa [#allocation6], 0
    %s9 = scalar_lea.sflag [#allocation6], 1
    %10 = vsyncpa %s9, 0
    loop: start=0, step=1, limit=4
    $region2: #{tpu_custom_call.1} parent=1 // loop_pre_header
      _
    $region3: #{tpu_custom_call.1} parent=1 // loop_header
      %s12 = sphi 0, %s16
      %p13 = scmp.ge.s32.totalorder %s12, 4
      %s22 = sphi 0, %s24
      %s25 = sphi 0, %s22
      %s26 = sphi 0, %s25
      %s42 = sphi 0, %s26
      %s46 = sphi 0, %s46
      %s48 = sphi 0, %s46
      %s49 = sphi 0, %s48
      %s63 = sphi 0, %s49
      %s69 = sphi 0, %s71
      %s72 = sphi 0, %s69
      %s73 = sphi 0, %s72
      %s89 = sphi 0, %s73
    $region4: #{tpu_custom_call.1} parent=1 // loop_header_branch
      %15 = sbr.rel (%p13) target = $region8
    $region5: #{tpu_custom_call.1} parent=1 // loop_body
      %s17 = ssub.s32 %s12, 1
      %s18 = ssub.s32 %s12, 2
      %s19 = sadd.s32 %s12, 1
      %s20 = ssub.s32 %s12, %s19
      %p21 = scmp.eq.s32.totalorder %s20, 0
      %s23 = sadd.s32 %s22, 1
      %s24 = scalar_select %p21, %s22, %s23
      %p27 = pneg %p21
      %p28 = scmp.eq.s32.totalorder %s12, 1
      %p29 = por %p27, %p28
      %p30 = scmp.ne.s32.totalorder %s22, %s25
      %p31 = scmp.eq.s32.totalorder %s12, 0
      %p32 = por %p30, %p31
      %p33 = scmp.ne.s32.totalorder %s22, %s25
      %p34 = scmp.eq.s32.totalorder %s17, 1
      %p35 = por %p33, %p34
      %p36 = scmp.ne.s32.totalorder %s25, %s26
      %p37 = scmp.eq.s32.totalorder %s17, 0
      %p38 = por %p36, %p37
      %p39 = scmp.ne.s32.totalorder %s25, %s26
      %p40 = scmp.eq.s32.totalorder %s18, 1
      %p41 = por %p39, %p40
      %p43 = scmp.ne.s32.totalorder %s26, %s42
      %p44 = scmp.eq.s32.totalorder %s18, 0
      %p45 = por %p43, %p44
      %s47 = sadd.s32 %s46, 1
      %p50 = scmp.eq.s32.totalorder %s12, 1
      %p51 = scmp.ne.s32.totalorder %s46, %s48
      %p52 = scmp.eq.s32.totalorder %s12, 0
      %p53 = por %p51, %p52
      %p54 = scmp.ne.s32.totalorder %s46, %s48
      %p55 = scmp.eq.s32.totalorder %s17, 1
      %p56 = por %p54, %p55
      %p57 = scmp.ne.s32.totalorder %s48, %s49
      %p58 = scmp.eq.s32.totalorder %s17, 0
      %p59 = por %p57, %p58
      %p60 = scmp.ne.s32.totalorder %s48, %s49
      %p61 = scmp.eq.s32.totalorder %s18, 1
      %p62 = por %p60, %p61
      %p64 = scmp.ne.s32.totalorder %s49, %s63
      %p65 = scmp.eq.s32.totalorder %s18, 0
      %p66 = por %p64, %p65
      %s67 = ssub.s32 %s12, %s19
      %p68 = scmp.eq.s32.totalorder %s67, 0
      %s70 = sadd.s32 %s69, 1
      %s71 = scalar_select %p68, %s69, %s70
      %p74 = pneg %p68
      %p75 = scmp.eq.s32.totalorder %s12, 1
      %p76 = por %p74, %p75
      %p77 = scmp.ne.s32.totalorder %s69, %s72
      %p78 = scmp.eq.s32.totalorder %s12, 0
      %p79 = por %p77, %p78
      %p80 = scmp.ne.s32.totalorder %s69, %s72
      %p81 = scmp.eq.s32.totalorder %s17, 1
      %p82 = por %p80, %p81
      %p83 = scmp.ne.s32.totalorder %s72, %s73
      %p84 = scmp.eq.s32.totalorder %s17, 0
      %p85 = por %p83, %p84
      %p86 = scmp.ne.s32.totalorder %s72, %s73
      %p87 = scmp.eq.s32.totalorder %s18, 1
      %p88 = por %p86, %p87
      %p90 = scmp.ne.s32.totalorder %s73, %s89
      %p91 = scmp.eq.s32.totalorder %s18, 0
      %p92 = por %p90, %p91
      %p93 = scmp.le.s32.totalorder 1, %s12
      %p94 = scmp.lt.s32.totalorder %s12, 3
      %p95 = pnand %p93, %p94
      %p96 = pneg %p95
      // Predicated region
      $region9: #{tpu_custom_call.1} parent=5 // pred_check
        _
      $region10: #{tpu_custom_call.1} parent=5 // pred_check_branch
        %98 = sbr.rel (%p95) target = $region12
      $region11: #{tpu_custom_call.1} parent=5 // pred_region
        %s99 = ssub.s32 %s12, 1
        // Predicated region
        $region13: #{tpu_custom_call.1} parent=11 // pred_check
          %p100 = pneg %p59
        $region14: #{tpu_custom_call.1} parent=11 // pred_check_branch
          %102 = sbr.rel (%p100) target = $region16
        $region15: #{tpu_custom_call.1} parent=11 // pred_region
          %s104 = ssub.s32 256, 256
          %105 = vsyncadd [#allocation7], %s104
          %s106 = sshll.u32 %s1, 4
          %s107 = int_to_ptr.vmem [resolvable:$true] %s106
          %112 = dma.vmem_to_smem %s107, 256, [#allocation5], [#allocation7], 128, 128, 8
        $region16: #{tpu_custom_call.1} parent=11 // pred_fallthru
          _
      $region12: #{tpu_custom_call.1} parent=5 // pred_fallthru
        _
      %p113 = scmp.lt.s32.totalorder %s12, 2
      // Predicated region
      $region17: #{tpu_custom_call.1} parent=5 // pred_check
        %p114 = pneg %p113
      $region18: #{tpu_custom_call.1} parent=5 // pred_check_branch
        %116 = sbr.rel (%p114) target = $region20
      $region19: #{tpu_custom_call.1} parent=5 // pred_region
        // Predicated region
        $region21: #{tpu_custom_call.1} parent=19 // pred_check
          %p117 = pneg %p32
        $region22: #{tpu_custom_call.1} parent=19 // pred_check_branch
          %119 = sbr.rel (%p117) target = $region24
        $region23: #{tpu_custom_call.1} parent=19 // pred_region
          %p120 = scmp.lt.s32.totalorder %s12, 1
          %s121 = scalar_select %p120, %s12, 1
          %s122 = smul.addr %s121, 4
          %s123 = scalar_lea.vmem %s0, %s122
        $region24: #{tpu_custom_call.1} parent=19 // pred_fallthru
          _
      $region20: #{tpu_custom_call.1} parent=5 // pred_fallthru
        _
      %p124 = scmp.le.s32.totalorder 1, %s12
      %p125 = scmp.lt.s32.totalorder %s12, 3
      %p126 = pnand %p124, %p125
      %p127 = pneg %p126
      // Predicated region
      $region25: #{tpu_custom_call.1} parent=5 // pred_check
        _
      $region26: #{tpu_custom_call.1} parent=5 // pred_check_branch
        %129 = sbr.rel (%p126) target = $region28
      $region27: #{tpu_custom_call.1} parent=5 // pred_region
        %s130 = ssub.s32 %s12, 1
        // Predicated region
        $region29: #{tpu_custom_call.1} parent=27 // pred_check
          %p131 = pneg %p59
        $region30: #{tpu_custom_call.1} parent=27 // pred_check_branch
          %133 = sbr.rel (%p131) target = $region32
        $region31: #{tpu_custom_call.1} parent=27 // pred_region
          %134 = dma.done [#allocation7], 256
        $region32: #{tpu_custom_call.1} parent=27 // pred_fallthru
          _
        %135 = sfence
        %p136 = scmp.lt.s32.totalorder %s17, 1
        %s137 = scalar_select %p136, %s17, 1
        %s138 = smul.addr %s137, 4
        %s139 = scalar_lea.vmem %s0, %s138
        %p140 = pneg %p38
        %p141 = pneg %p35
        %p142 = pneg %p59
        %p143 = pneg %p56
        %p144 = pneg %p85
        %p145 = pneg %p82
        %s146 = sand.u32 %s72, 1
        %s147 = scalar_lea.sflag [#allocation6], %s146
        %s148 = sand.u32 %s72, 1
        %s149 = smul.addr %s148, 4
        %s150 = scalar_lea.vmem [#allocation8], %s149
        %p151 = scmp.lt.s32.totalorder %s17, 1
        %s152 = scalar_select %p151, %s17, 1
        %s153 = smul.addr %s152, 4
        %s154 = scalar_lea.vmem %s0, %s153
        %s155 = sld [smem:[#allocation5]]
        %v156 = vld [vmem:[%s154] sm:$0x1]
        %v157 = vstv %s155
        %v158 = vmul.f32 %v157, %v156
        %s159 = sld [smem:[#allocation5 + $0x80]]
        %v160 = vld [vmem:[%s154 + $0x1] sm:$0x1]
        %v161 = vstv %s159
        %v162 = vmul.f32 %v161, %v160
        %v163 = vadd.f32 %v158, %v162
        %s164 = sld [smem:[#allocation5 + $0x100]]
        %v165 = vld [vmem:[%s154 + $0x2] sm:$0x1]
        %v166 = vstv %s164
        %v167 = vmul.f32 %v166, %v165
        %v168 = vadd.f32 %v163, %v167
        %s169 = sld [smem:[#allocation5 + $0x180]]
        %v170 = vld [vmem:[%s154 + $0x3] sm:$0x1]
        %v171 = vstv %s169
        %v172 = vmul.f32 %v171, %v170
        %v173 = vadd.f32 %v168, %v172
        %s174 = sld [smem:[#allocation5 + $0x600]]
        %v175 = vstv %s174
        %v176 = vadd.f32 %v173, %v175
        %177 = vst [vmem:[#allocation2] sm:$0x1] %v176
        %v178 = vtanh.pop %v176
        %179 = vst [vmem:[#allocation3] sm:$0x1] %v178
        %s180 = sld [smem:[#allocation5 + $0x1]]
        %v181 = vld [vmem:[%s154] sm:$0x1]
        %v182 = vstv %s180
        %v183 = vmul.f32 %v182, %v181
        %s184 = sld [smem:[#allocation5 + $0x81]]
        %v185 = vld [vmem:[%s154 + $0x1] sm:$0x1]
        %v186 = vstv %s184
        %v187 = vmul.f32 %v186, %v185
        %v188 = vadd.f32 %v183, %v187
        %s189 = sld [smem:[#allocation5 + $0x101]]
        %v190 = vld [vmem:[%s154 + $0x2] sm:$0x1]
        %v191 = vstv %s189
        %v192 = vmul.f32 %v191, %v190
        %v193 = vadd.f32 %v188, %v192
        %s194 = sld [smem:[#allocation5 + $0x181]]
        %v195 = vld [vmem:[%s154 + $0x3] sm:$0x1]
        %v196 = vstv %s194
        %v197 = vmul.f32 %v196, %v195
        %v198 = vadd.f32 %v193, %v197
        %s199 = sld [smem:[#allocation5 + $0x601]]
        %v200 = vstv %s199
        %v201 = vadd.f32 %v198, %v200
        %202 = vst [vmem:[#allocation2 + $0x1] sm:$0x1] %v201
        %v203 = vtanh.pop %v201
        %204 = vst [vmem:[#allocation3 + $0x1] sm:$0x1] %v203
        %s205 = sld [smem:[#allocation5 + $0x2]]
        %v206 = vld [vmem:[%s154] sm:$0x1]
        %v207 = vstv %s205
        %v208 = vmul.f32 %v207, %v206
        %s209 = sld [smem:[#allocation5 + $0x82]]
        %v210 = vld [vmem:[%s154 + $0x1] sm:$0x1]
        %v211 = vstv %s209
        %v212 = vmul.f32 %v211, %v210
        %v213 = vadd.f32 %v208, %v212
        %s214 = sld [smem:[#allocation5 + $0x102]]
        %v215 = vld [vmem:[%s154 + $0x2] sm:$0x1]
        %v216 = vstv %s214
        %v217 = vmul.f32 %v216, %v215
        %v218 = vadd.f32 %v213, %v217
        %s219 = sld [smem:[#allocation5 + $0x182]]
        %v220 = vld [vmem:[%s154 + $0x3] sm:$0x1]
        %v221 = vstv %s219
        %v222 = vmul.f32 %v221, %v220
        %v223 = vadd.f32 %v218, %v222
        %s224 = sld [smem:[#allocation5 + $0x602]]
        %v225 = vstv %s224
        %v226 = vadd.f32 %v223, %v225
        %227 = vst [vmem:[#allocation2 + $0x2] sm:$0x1] %v226
        %v228 = vtanh.pop %v226
        %229 = vst [vmem:[#allocation3 + $0x2] sm:$0x1] %v228
        %s230 = sld [smem:[#allocation5 + $0x3]]
        %v231 = vld [vmem:[%s154] sm:$0x1]
        %v232 = vstv %s230
        %v233 = vmul.f32 %v232, %v231
        %s234 = sld [smem:[#allocation5 + $0x83]]
        %v235 = vld [vmem:[%s154 + $0x1] sm:$0x1]
        %v236 = vstv %s234
        %v237 = vmul.f32 %v236, %v235
        %v238 = vadd.f32 %v233, %v237
        %s239 = sld [smem:[#allocation5 + $0x103]]
        %v240 = vld [vmem:[%s154 + $0x2] sm:$0x1]
        %v241 = vstv %s239
        %v242 = vmul.f32 %v241, %v240
        %v243 = vadd.f32 %v238, %v242
        %s244 = sld [smem:[#allocation5 + $0x183]]
        %v245 = vld [vmem:[%s154 + $0x3] sm:$0x1]
        %v246 = vstv %s244
        %v247 = vmul.f32 %v246, %v245
        %v248 = vadd.f32 %v243, %v247
        %s249 = sld [smem:[#allocation5 + $0x603]]
        %v250 = vstv %s249
        %v251 = vadd.f32 %v248, %v250
        %252 = vst [vmem:[#allocation2 + $0x3] sm:$0x1] %v251
        %v253 = vtanh.pop %v251
        %254 = vst [vmem:[#allocation3 + $0x3] sm:$0x1] %v253
        %s255 = sld [smem:[#allocation5 + $0x4]]
        %v256 = vld [vmem:[%s154] sm:$0x1]
        %v257 = vstv %s255
        %v258 = vmul.f32 %v257, %v256
        %s259 = sld [smem:[#allocation5 + $0x84]]
        %v260 = vld [vmem:[%s154 + $0x1] sm:$0x1]
        %v261 = vstv %s259
        %v262 = vmul.f32 %v261, %v260
        %v263 = vadd.f32 %v258, %v262
        %s264 = sld [smem:[#allocation5 + $0x104]]
        %v265 = vld [vmem:[%s154 + $0x2] sm:$0x1]
        %v266 = vstv %s264
        %v267 = vmul.f32 %v266, %v265
        %v268 = vadd.f32 %v263, %v267
        %s269 = sld [smem:[#allocation5 + $0x184]]
        %v270 = vld [vmem:[%s154 + $0x3] sm:$0x1]
        %v271 = vstv %s269
        %v272 = vmul.f32 %v271, %v270
        %v273 = vadd.f32 %v268, %v272
        %s274 = sld [smem:[#allocation5 + $0x604]]
        %v275 = vstv %s274
        %v276 = vadd.f32 %v273, %v275
        %277 = vst [vmem:[#allocation2 + $0x4] sm:$0x1] %v276
        %v278 = vtanh.pop %v276
        %279 = vst [vmem:[#allocation3 + $0x4] sm:$0x1] %v278
        %s280 = sld [smem:[#allocation5 + $0x5]]
        %v281 = vld [vmem:[%s154] sm:$0x1]
        %v282 = vstv %s280
        %v283 = vmul.f32 %v282, %v281
        %s284 = sld [smem:[#allocation5 + $0x85]]
        %v285 = vld [vmem:[%s154 + $0x1] sm:$0x1]
        %v286 = vstv %s284
        %v287 = vmul.f32 %v286, %v285
        %v288 = vadd.f32 %v283, %v287
        %s289 = sld [smem:[#allocation5 + $0x105]]
        %v290 = vld [vmem:[%s154 + $0x2] sm:$0x1]
        %v291 = vstv %s289
        %v292 = vmul.f32 %v291, %v290
        %v293 = vadd.f32 %v288, %v292
        %s294 = sld [smem:[#allocation5 + $0x185]]
        %v295 = vld [vmem:[%s154 + $0x3] sm:$0x1]
        %v296 = vstv %s294
        %v297 = vmul.f32 %v296, %v295
        %v298 = vadd.f32 %v293, %v297
        %s299 = sld [smem:[#allocation5 + $0x605]]
        %v300 = vstv %s299
        %v301 = vadd.f32 %v298, %v300
        %302 = vst [vmem:[#allocation2 + $0x5] sm:$0x1] %v301
        %v303 = vtanh.pop %v301
        %304 = vst [vmem:[#allocation3 + $0x5] sm:$0x1] %v303
        %s305 = sld [smem:[#allocation5 + $0x6]]
        %v306 = vld [vmem:[%s154] sm:$0x1]
        %v307 = vstv %s305
        %v308 = vmul.f32 %v307, %v306
        %s309 = sld [smem:[#allocation5 + $0x86]]
        %v310 = vld [vmem:[%s154 + $0x1] sm:$0x1]
        %v311 = vstv %s309
        %v312 = vmul.f32 %v311, %v310
        %v313 = vadd.f32 %v308, %v312
        %s314 = sld [smem:[#allocation5 + $0x106]]
        %v315 = vld [vmem:[%s154 + $0x2] sm:$0x1]
        %v316 = vstv %s314
        %v317 = vmul.f32 %v316, %v315
        %v318 = vadd.f32 %v313, %v317
        %s319 = sld [smem:[#allocation5 + $0x186]]
        %v320 = vld [vmem:[%s154 + $0x3] sm:$0x1]
        %v321 = vstv %s319
        %v322 = vmul.f32 %v321, %v320
        %v323 = vadd.f32 %v318, %v322
        %s324 = sld [smem:[#allocation5 + $0x606]]
        %v325 = vstv %s324
        %v326 = vadd.f32 %v323, %v325
        %327 = vst [vmem:[#allocation2 + $0x6] sm:$0x1] %v326
        %v328 = vtanh.pop %v326
        %329 = vst [vmem:[#allocation3 + $0x6] sm:$0x1] %v328
        %s330 = sld [smem:[#allocation5 + $0x7]]
        %v331 = vld [vmem:[%s154] sm:$0x1]
        %v332 = vstv %s330
        %v333 = vmul.f32 %v332, %v331
        %s334 = sld [smem:[#allocation5 + $0x87]]
        %v335 = vld [vmem:[%s154 + $0x1] sm:$0x1]
        %v336 = vstv %s334
        %v337 = vmul.f32 %v336, %v335
        %v338 = vadd.f32 %v333, %v337
        %s339 = sld [smem:[#allocation5 + $0x107]]
        %v340 = vld [vmem:[%s154 + $0x2] sm:$0x1]
        %v341 = vstv %s339
        %v342 = vmul.f32 %v341, %v340
        %v343 = vadd.f32 %v338, %v342
        %s344 = sld [smem:[#allocation5 + $0x187]]
        %v345 = vld [vmem:[%s154 + $0x3] sm:$0x1]
        %v346 = vstv %s344
        %v347 = vmul.f32 %v346, %v345
        %v348 = vadd.f32 %v343, %v347
        %s349 = sld [smem:[#allocation5 + $0x607]]
        %v350 = vstv %s349
        %v351 = vadd.f32 %v348, %v350
        %352 = vst [vmem:[#allocation2 + $0x7] sm:$0x1] %v351
        %v353 = vtanh.pop %v351
        %354 = vst [vmem:[#allocation3 + $0x7] sm:$0x1] %v353
        %v355 = vld [vmem:[#allocation2] sm:$0x1]
        %s356 = sld [smem:[#allocation5 + $0x200]]
        %v357 = vld [vmem:[#allocation3] sm:$0x1]
        %v358 = vstv %s356
        %v359 = vmul.f32 %v358, %v357
        %v360 = vadd.f32 %v355, %v359
        %s361 = sld [smem:[#allocation5 + $0x280]]
        %v362 = vld [vmem:[#allocation3 + $0x1] sm:$0x1]
        %v363 = vstv %s361
        %v364 = vmul.f32 %v363, %v362
        %v365 = vadd.f32 %v360, %v364
        %s366 = sld [smem:[#allocation5 + $0x300]]
        %v367 = vld [vmem:[#allocation3 + $0x2] sm:$0x1]
        %v368 = vstv %s366
        %v369 = vmul.f32 %v368, %v367
        %v370 = vadd.f32 %v365, %v369
        %s371 = sld [smem:[#allocation5 + $0x380]]
        %v372 = vld [vmem:[#allocation3 + $0x3] sm:$0x1]
        %v373 = vstv %s371
        %v374 = vmul.f32 %v373, %v372
        %v375 = vadd.f32 %v370, %v374
        %s376 = sld [smem:[#allocation5 + $0x400]]
        %v377 = vld [vmem:[#allocation3 + $0x4] sm:$0x1]
        %v378 = vstv %s376
        %v379 = vmul.f32 %v378, %v377
        %v380 = vadd.f32 %v375, %v379
        %s381 = sld [smem:[#allocation5 + $0x480]]
        %v382 = vld [vmem:[#allocation3 + $0x5] sm:$0x1]
        %v383 = vstv %s381
        %v384 = vmul.f32 %v383, %v382
        %v385 = vadd.f32 %v380, %v384
        %s386 = sld [smem:[#allocation5 + $0x500]]
        %v387 = vld [vmem:[#allocation3 + $0x6] sm:$0x1]
        %v388 = vstv %s386
        %v389 = vmul.f32 %v388, %v387
        %v390 = vadd.f32 %v385, %v389
        %s391 = sld [smem:[#allocation5 + $0x580]]
        %v392 = vld [vmem:[#allocation3 + $0x7] sm:$0x1]
        %v393 = vstv %s391
        %v394 = vmul.f32 %v393, %v392
        %v395 = vadd.f32 %v390, %v394
        %v396 = vtanh.pop %v395
        %397 = vst [vmem:[#allocation4] sm:$0x1] %v396
        %v398 = vld [vmem:[#allocation2 + $0x1] sm:$0x1]
        %s399 = sld [smem:[#allocation5 + $0x201]]
        %v400 = vld [vmem:[#allocation3] sm:$0x1]
        %v401 = vstv %s399
        %v402 = vmul.f32 %v401, %v400
        %v403 = vadd.f32 %v398, %v402
        %s404 = sld [smem:[#allocation5 + $0x281]]
        %v405 = vld [vmem:[#allocation3 + $0x1] sm:$0x1]
        %v406 = vstv %s404
        %v407 = vmul.f32 %v406, %v405
        %v408 = vadd.f32 %v403, %v407
        %s409 = sld [smem:[#allocation5 + $0x301]]
        %v410 = vld [vmem:[#allocation3 + $0x2] sm:$0x1]
        %v411 = vstv %s409
        %v412 = vmul.f32 %v411, %v410
        %v413 = vadd.f32 %v408, %v412
        %s414 = sld [smem:[#allocation5 + $0x381]]
        %v415 = vld [vmem:[#allocation3 + $0x3] sm:$0x1]
        %v416 = vstv %s414
        %v417 = vmul.f32 %v416, %v415
        %v418 = vadd.f32 %v413, %v417
        %s419 = sld [smem:[#allocation5 + $0x401]]
        %v420 = vld [vmem:[#allocation3 + $0x4] sm:$0x1]
        %v421 = vstv %s419
        %v422 = vmul.f32 %v421, %v420
        %v423 = vadd.f32 %v418, %v422
        %s424 = sld [smem:[#allocation5 + $0x481]]
        %v425 = vld [vmem:[#allocation3 + $0x5] sm:$0x1]
        %v426 = vstv %s424
        %v427 = vmul.f32 %v426, %v425
        %v428 = vadd.f32 %v423, %v427
        %s429 = sld [smem:[#allocation5 + $0x501]]
        %v430 = vld [vmem:[#allocation3 + $0x6] sm:$0x1]
        %v431 = vstv %s429
        %v432 = vmul.f32 %v431, %v430
        %v433 = vadd.f32 %v428, %v432
        %s434 = sld [smem:[#allocation5 + $0x581]]
        %v435 = vld [vmem:[#allocation3 + $0x7] sm:$0x1]
        %v436 = vstv %s434
        %v437 = vmul.f32 %v436, %v435
        %v438 = vadd.f32 %v433, %v437
        %v439 = vtanh.pop %v438
        %440 = vst [vmem:[#allocation4 + $0x1] sm:$0x1] %v439
        %v441 = vld [vmem:[#allocation2 + $0x2] sm:$0x1]
        %s442 = sld [smem:[#allocation5 + $0x202]]
        %v443 = vld [vmem:[#allocation3] sm:$0x1]
        %v444 = vstv %s442
        %v445 = vmul.f32 %v444, %v443
        %v446 = vadd.f32 %v441, %v445
        %s447 = sld [smem:[#allocation5 + $0x282]]
        %v448 = vld [vmem:[#allocation3 + $0x1] sm:$0x1]
        %v449 = vstv %s447
        %v450 = vmul.f32 %v449, %v448
        %v451 = vadd.f32 %v446, %v450
        %s452 = sld [smem:[#allocation5 + $0x302]]
        %v453 = vld [vmem:[#allocation3 + $0x2] sm:$0x1]
        %v454 = vstv %s452
        %v455 = vmul.f32 %v454, %v453
        %v456 = vadd.f32 %v451, %v455
        %s457 = sld [smem:[#allocation5 + $0x382]]
        %v458 = vld [vmem:[#allocation3 + $0x3] sm:$0x1]
        %v459 = vstv %s457
        %v460 = vmul.f32 %v459, %v458
        %v461 = vadd.f32 %v456, %v460
        %s462 = sld [smem:[#allocation5 + $0x402]]
        %v463 = vld [vmem:[#allocation3 + $0x4] sm:$0x1]
        %v464 = vstv %s462
        %v465 = vmul.f32 %v464, %v463
        %v466 = vadd.f32 %v461, %v465
        %s467 = sld [smem:[#allocation5 + $0x482]]
        %v468 = vld [vmem:[#allocation3 + $0x5] sm:$0x1]
        %v469 = vstv %s467
        %v470 = vmul.f32 %v469, %v468
        %v471 = vadd.f32 %v466, %v470
        %s472 = sld [smem:[#allocation5 + $0x502]]
        %v473 = vld [vmem:[#allocation3 + $0x6] sm:$0x1]
        %v474 = vstv %s472
        %v475 = vmul.f32 %v474, %v473
        %v476 = vadd.f32 %v471, %v475
        %s477 = sld [smem:[#allocation5 + $0x582]]
        %v478 = vld [vmem:[#allocation3 + $0x7] sm:$0x1]
        %v479 = vstv %s477
        %v480 = vmul.f32 %v479, %v478
        %v481 = vadd.f32 %v476, %v480
        %v482 = vtanh.pop %v481
        %483 = vst [vmem:[#allocation4 + $0x2] sm:$0x1] %v482
        %v484 = vld [vmem:[#allocation2 + $0x3] sm:$0x1]
        %s485 = sld [smem:[#allocation5 + $0x203]]
        %v486 = vld [vmem:[#allocation3] sm:$0x1]
        %v487 = vstv %s485
        %v488 = vmul.f32 %v487, %v486
        %v489 = vadd.f32 %v484, %v488
        %s490 = sld [smem:[#allocation5 + $0x283]]
        %v491 = vld [vmem:[#allocation3 + $0x1] sm:$0x1]
        %v492 = vstv %s490
        %v493 = vmul.f32 %v492, %v491
        %v494 = vadd.f32 %v489, %v493
        %s495 = sld [smem:[#allocation5 + $0x303]]
        %v496 = vld [vmem:[#allocation3 + $0x2] sm:$0x1]
        %v497 = vstv %s495
        %v498 = vmul.f32 %v497, %v496
        %v499 = vadd.f32 %v494, %v498
        %s500 = sld [smem:[#allocation5 + $0x383]]
        %v501 = vld [vmem:[#allocation3 + $0x3] sm:$0x1]
        %v502 = vstv %s500
        %v503 = vmul.f32 %v502, %v501
        %v504 = vadd.f32 %v499, %v503
        %s505 = sld [smem:[#allocation5 + $0x403]]
        %v506 = vld [vmem:[#allocation3 + $0x4] sm:$0x1]
        %v507 = vstv %s505
        %v508 = vmul.f32 %v507, %v506
        %v509 = vadd.f32 %v504, %v508
        %s510 = sld [smem:[#allocation5 + $0x483]]
        %v511 = vld [vmem:[#allocation3 + $0x5] sm:$0x1]
        %v512 = vstv %s510
        %v513 = vmul.f32 %v512, %v511
        %v514 = vadd.f32 %v509, %v513
        %s515 = sld [smem:[#allocation5 + $0x503]]
        %v516 = vld [vmem:[#allocation3 + $0x6] sm:$0x1]
        %v517 = vstv %s515
        %v518 = vmul.f32 %v517, %v516
        %v519 = vadd.f32 %v514, %v518
        %s520 = sld [smem:[#allocation5 + $0x583]]
        %v521 = vld [vmem:[#allocation3 + $0x7] sm:$0x1]
        %v522 = vstv %s520
        %v523 = vmul.f32 %v522, %v521
        %v524 = vadd.f32 %v519, %v523
        %v525 = vtanh.pop %v524
        %526 = vst [vmem:[#allocation4 + $0x3] sm:$0x1] %v525
        %v527 = vld [vmem:[#allocation2 + $0x4] sm:$0x1]
        %s528 = sld [smem:[#allocation5 + $0x204]]
        %v529 = vld [vmem:[#allocation3] sm:$0x1]
        %v530 = vstv %s528
        %v531 = vmul.f32 %v530, %v529
        %v532 = vadd.f32 %v527, %v531
        %s533 = sld [smem:[#allocation5 + $0x284]]
        %v534 = vld [vmem:[#allocation3 + $0x1] sm:$0x1]
        %v535 = vstv %s533
        %v536 = vmul.f32 %v535, %v534
        %v537 = vadd.f32 %v532, %v536
        %s538 = sld [smem:[#allocation5 + $0x304]]
        %v539 = vld [vmem:[#allocation3 + $0x2] sm:$0x1]
        %v540 = vstv %s538
        %v541 = vmul.f32 %v540, %v539
        %v542 = vadd.f32 %v537, %v541
        %s543 = sld [smem:[#allocation5 + $0x384]]
        %v544 = vld [vmem:[#allocation3 + $0x3] sm:$0x1]
        %v545 = vstv %s543
        %v546 = vmul.f32 %v545, %v544
        %v547 = vadd.f32 %v542, %v546
        %s548 = sld [smem:[#allocation5 + $0x404]]
        %v549 = vld [vmem:[#allocation3 + $0x4] sm:$0x1]
        %v550 = vstv %s548
        %v551 = vmul.f32 %v550, %v549
        %v552 = vadd.f32 %v547, %v551
        %s553 = sld [smem:[#allocation5 + $0x484]]
        %v554 = vld [vmem:[#allocation3 + $0x5] sm:$0x1]
        %v555 = vstv %s553
        %v556 = vmul.f32 %v555, %v554
        %v557 = vadd.f32 %v552, %v556
        %s558 = sld [smem:[#allocation5 + $0x504]]
        %v559 = vld [vmem:[#allocation3 + $0x6] sm:$0x1]
        %v560 = vstv %s558
        %v561 = vmul.f32 %v560, %v559
        %v562 = vadd.f32 %v557, %v561
        %s563 = sld [smem:[#allocation5 + $0x584]]
        %v564 = vld [vmem:[#allocation3 + $0x7] sm:$0x1]
        %v565 = vstv %s563
        %v566 = vmul.f32 %v565, %v564
        %v567 = vadd.f32 %v562, %v566
        %v568 = vtanh.pop %v567
        %569 = vst [vmem:[#allocation4 + $0x4] sm:$0x1] %v568
        %v570 = vld [vmem:[#allocation2 + $0x5] sm:$0x1]
        %s571 = sld [smem:[#allocation5 + $0x205]]
        %v572 = vld [vmem:[#allocation3] sm:$0x1]
        %v573 = vstv %s571
        %v574 = vmul.f32 %v573, %v572
        %v575 = vadd.f32 %v570, %v574
        %s576 = sld [smem:[#allocation5 + $0x285]]
        %v577 = vld [vmem:[#allocation3 + $0x1] sm:$0x1]
        %v578 = vstv %s576
        %v579 = vmul.f32 %v578, %v577
        %v580 = vadd.f32 %v575, %v579
        %s581 = sld [smem:[#allocation5 + $0x305]]
        %v582 = vld [vmem:[#allocation3 + $0x2] sm:$0x1]
        %v583 = vstv %s581
        %v584 = vmul.f32 %v583, %v582
        %v585 = vadd.f32 %v580, %v584
        %s586 = sld [smem:[#allocation5 + $0x385]]
        %v587 = vld [vmem:[#allocation3 + $0x3] sm:$0x1]
        %v588 = vstv %s586
        %v589 = vmul.f32 %v588, %v587
        %v590 = vadd.f32 %v585, %v589
        %s591 = sld [smem:[#allocation5 + $0x405]]
        %v592 = vld [vmem:[#allocation3 + $0x4] sm:$0x1]
        %v593 = vstv %s591
        %v594 = vmul.f32 %v593, %v592
        %v595 = vadd.f32 %v590, %v594
        %s596 = sld [smem:[#allocation5 + $0x485]]
        %v597 = vld [vmem:[#allocation3 + $0x5] sm:$0x1]
        %v598 = vstv %s596
        %v599 = vmul.f32 %v598, %v597
        %v600 = vadd.f32 %v595, %v599
        %s601 = sld [smem:[#allocation5 + $0x505]]
        %v602 = vld [vmem:[#allocation3 + $0x6] sm:$0x1]
        %v603 = vstv %s601
        %v604 = vmul.f32 %v603, %v602
        %v605 = vadd.f32 %v600, %v604
        %s606 = sld [smem:[#allocation5 + $0x585]]
        %v607 = vld [vmem:[#allocation3 + $0x7] sm:$0x1]
        %v608 = vstv %s606
        %v609 = vmul.f32 %v608, %v607
        %v610 = vadd.f32 %v605, %v609
        %v611 = vtanh.pop %v610
        %612 = vst [vmem:[#allocation4 + $0x5] sm:$0x1] %v611
        %v613 = vld [vmem:[#allocation2 + $0x6] sm:$0x1]
        %s614 = sld [smem:[#allocation5 + $0x206]]
        %v615 = vld [vmem:[#allocation3] sm:$0x1]
        %v616 = vstv %s614
        %v617 = vmul.f32 %v616, %v615
        %v618 = vadd.f32 %v613, %v617
        %s619 = sld [smem:[#allocation5 + $0x286]]
        %v620 = vld [vmem:[#allocation3 + $0x1] sm:$0x1]
        %v621 = vstv %s619
        %v622 = vmul.f32 %v621, %v620
        %v623 = vadd.f32 %v618, %v622
        %s624 = sld [smem:[#allocation5 + $0x306]]
        %v625 = vld [vmem:[#allocation3 + $0x2] sm:$0x1]
        %v626 = vstv %s624
        %v627 = vmul.f32 %v626, %v625
        %v628 = vadd.f32 %v623, %v627
        %s629 = sld [smem:[#allocation5 + $0x386]]
        %v630 = vld [vmem:[#allocation3 + $0x3] sm:$0x1]
        %v631 = vstv %s629
        %v632 = vmul.f32 %v631, %v630
        %v633 = vadd.f32 %v628, %v632
        %s634 = sld [smem:[#allocation5 + $0x406]]
        %v635 = vld [vmem:[#allocation3 + $0x4] sm:$0x1]
        %v636 = vstv %s634
        %v637 = vmul.f32 %v636, %v635
        %v638 = vadd.f32 %v633, %v637
        %s639 = sld [smem:[#allocation5 + $0x486]]
        %v640 = vld [vmem:[#allocation3 + $0x5] sm:$0x1]
        %v641 = vstv %s639
        %v642 = vmul.f32 %v641, %v640
        %v643 = vadd.f32 %v638, %v642
        %s644 = sld [smem:[#allocation5 + $0x506]]
        %v645 = vld [vmem:[#allocation3 + $0x6] sm:$0x1]
        %v646 = vstv %s644
        %v647 = vmul.f32 %v646, %v645
        %v648 = vadd.f32 %v643, %v647
        %s649 = sld [smem:[#allocation5 + $0x586]]
        %v650 = vld [vmem:[#allocation3 + $0x7] sm:$0x1]
        %v651 = vstv %s649
        %v652 = vmul.f32 %v651, %v650
        %v653 = vadd.f32 %v648, %v652
        %v654 = vtanh.pop %v653
        %655 = vst [vmem:[#allocation4 + $0x6] sm:$0x1] %v654
        %v656 = vld [vmem:[#allocation2 + $0x7] sm:$0x1]
        %s657 = sld [smem:[#allocation5 + $0x207]]
        %v658 = vld [vmem:[#allocation3] sm:$0x1]
        %v659 = vstv %s657
        %v660 = vmul.f32 %v659, %v658
        %v661 = vadd.f32 %v656, %v660
        %s662 = sld [smem:[#allocation5 + $0x287]]
        %v663 = vld [vmem:[#allocation3 + $0x1] sm:$0x1]
        %v664 = vstv %s662
        %v665 = vmul.f32 %v664, %v663
        %v666 = vadd.f32 %v661, %v665
        %s667 = sld [smem:[#allocation5 + $0x307]]
        %v668 = vld [vmem:[#allocation3 + $0x2] sm:$0x1]
        %v669 = vstv %s667
        %v670 = vmul.f32 %v669, %v668
        %v671 = vadd.f32 %v666, %v670
        %s672 = sld [smem:[#allocation5 + $0x387]]
        %v673 = vld [vmem:[#allocation3 + $0x3] sm:$0x1]
        %v674 = vstv %s672
        %v675 = vmul.f32 %v674, %v673
        %v676 = vadd.f32 %v671, %v675
        %s677 = sld [smem:[#allocation5 + $0x407]]
        %v678 = vld [vmem:[#allocation3 + $0x4] sm:$0x1]
        %v679 = vstv %s677
        %v680 = vmul.f32 %v679, %v678
        %v681 = vadd.f32 %v676, %v680
        %s682 = sld [smem:[#allocation5 + $0x487]]
        %v683 = vld [vmem:[#allocation3 + $0x5] sm:$0x1]
        %v684 = vstv %s682
        %v685 = vmul.f32 %v684, %v683
        %v686 = vadd.f32 %v681, %v685
        %s687 = sld [smem:[#allocation5 + $0x507]]
        %v688 = vld [vmem:[#allocation3 + $0x6] sm:$0x1]
        %v689 = vstv %s687
        %v690 = vmul.f32 %v689, %v688
        %v691 = vadd.f32 %v686, %v690
        %s692 = sld [smem:[#allocation5 + $0x587]]
        %v693 = vld [vmem:[#allocation3 + $0x7] sm:$0x1]
        %v694 = vstv %s692
        %v695 = vmul.f32 %v694, %v693
        %v696 = vadd.f32 %v691, %v695
        %v697 = vtanh.pop %v696
        %698 = vst [vmem:[#allocation4 + $0x7] sm:$0x1] %v697
        %v699 = vld [vmem:[#allocation2] sm:$0x1]
        %s700 = sld [smem:[#allocation5 + $0x200]]
        %v701 = vld [vmem:[#allocation4] sm:$0x1]
        %v702 = vstv %s700
        %v703 = vmul.f32 %v702, %v701
        %v704 = vadd.f32 %v699, %v703
        %s705 = sld [smem:[#allocation5 + $0x280]]
        %v706 = vld [vmem:[#allocation4 + $0x1] sm:$0x1]
        %v707 = vstv %s705
        %v708 = vmul.f32 %v707, %v706
        %v709 = vadd.f32 %v704, %v708
        %s710 = sld [smem:[#allocation5 + $0x300]]
        %v711 = vld [vmem:[#allocation4 + $0x2] sm:$0x1]
        %v712 = vstv %s710
        %v713 = vmul.f32 %v712, %v711
        %v714 = vadd.f32 %v709, %v713
        %s715 = sld [smem:[#allocation5 + $0x380]]
        %v716 = vld [vmem:[#allocation4 + $0x3] sm:$0x1]
        %v717 = vstv %s715
        %v718 = vmul.f32 %v717, %v716
        %v719 = vadd.f32 %v714, %v718
        %s720 = sld [smem:[#allocation5 + $0x400]]
        %v721 = vld [vmem:[#allocation4 + $0x4] sm:$0x1]
        %v722 = vstv %s720
        %v723 = vmul.f32 %v722, %v721
        %v724 = vadd.f32 %v719, %v723
        %s725 = sld [smem:[#allocation5 + $0x480]]
        %v726 = vld [vmem:[#allocation4 + $0x5] sm:$0x1]
        %v727 = vstv %s725
        %v728 = vmul.f32 %v727, %v726
        %v729 = vadd.f32 %v724, %v728
        %s730 = sld [smem:[#allocation5 + $0x500]]
        %v731 = vld [vmem:[#allocation4 + $0x6] sm:$0x1]
        %v732 = vstv %s730
        %v733 = vmul.f32 %v732, %v731
        %v734 = vadd.f32 %v729, %v733
        %s735 = sld [smem:[#allocation5 + $0x580]]
        %v736 = vld [vmem:[#allocation4 + $0x7] sm:$0x1]
        %v737 = vstv %s735
        %v738 = vmul.f32 %v737, %v736
        %v739 = vadd.f32 %v734, %v738
        %v740 = vtanh.pop %v739
        %741 = vst [vmem:[%s150] sm:$0x1] %v740
        %v742 = vld [vmem:[#allocation2 + $0x1] sm:$0x1]
        %s743 = sld [smem:[#allocation5 + $0x201]]
        %v744 = vld [vmem:[#allocation4] sm:$0x1]
        %v745 = vstv %s743
        %v746 = vmul.f32 %v745, %v744
        %v747 = vadd.f32 %v742, %v746
        %s748 = sld [smem:[#allocation5 + $0x281]]
        %v749 = vld [vmem:[#allocation4 + $0x1] sm:$0x1]
        %v750 = vstv %s748
        %v751 = vmul.f32 %v750, %v749
        %v752 = vadd.f32 %v747, %v751
        %s753 = sld [smem:[#allocation5 + $0x301]]
        %v754 = vld [vmem:[#allocation4 + $0x2] sm:$0x1]
        %v755 = vstv %s753
        %v756 = vmul.f32 %v755, %v754
        %v757 = vadd.f32 %v752, %v756
        %s758 = sld [smem:[#allocation5 + $0x381]]
        %v759 = vld [vmem:[#allocation4 + $0x3] sm:$0x1]
        %v760 = vstv %s758
        %v761 = vmul.f32 %v760, %v759
        %v762 = vadd.f32 %v757, %v761
        %s763 = sld [smem:[#allocation5 + $0x401]]
        %v764 = vld [vmem:[#allocation4 + $0x4] sm:$0x1]
        %v765 = vstv %s763
        %v766 = vmul.f32 %v765, %v764
        %v767 = vadd.f32 %v762, %v766
        %s768 = sld [smem:[#allocation5 + $0x481]]
        %v769 = vld [vmem:[#allocation4 + $0x5] sm:$0x1]
        %v770 = vstv %s768
        %v771 = vmul.f32 %v770, %v769
        %v772 = vadd.f32 %v767, %v771
        %s773 = sld [smem:[#allocation5 + $0x501]]
        %v774 = vld [vmem:[#allocation4 + $0x6] sm:$0x1]
        %v775 = vstv %s773
        %v776 = vmul.f32 %v775, %v774
        %v777 = vadd.f32 %v772, %v776
        %s778 = sld [smem:[#allocation5 + $0x581]]
        %v779 = vld [vmem:[#allocation4 + $0x7] sm:$0x1]
        %v780 = vstv %s778
        %v781 = vmul.f32 %v780, %v779
        %v782 = vadd.f32 %v777, %v781
        %v783 = vtanh.pop %v782
        %784 = vst [vmem:[%s150 + $0x1] sm:$0x1] %v783
        %v785 = vld [vmem:[#allocation2 + $0x2] sm:$0x1]
        %s786 = sld [smem:[#allocation5 + $0x202]]
        %v787 = vld [vmem:[#allocation4] sm:$0x1]
        %v788 = vstv %s786
        %v789 = vmul.f32 %v788, %v787
        %v790 = vadd.f32 %v785, %v789
        %s791 = sld [smem:[#allocation5 + $0x282]]
        %v792 = vld [vmem:[#allocation4 + $0x1] sm:$0x1]
        %v793 = vstv %s791
        %v794 = vmul.f32 %v793, %v792
        %v795 = vadd.f32 %v790, %v794
        %s796 = sld [smem:[#allocation5 + $0x302]]
        %v797 = vld [vmem:[#allocation4 + $0x2] sm:$0x1]
        %v798 = vstv %s796
        %v799 = vmul.f32 %v798, %v797
        %v800 = vadd.f32 %v795, %v799
        %s801 = sld [smem:[#allocation5 + $0x382]]
        %v802 = vld [vmem:[#allocation4 + $0x3] sm:$0x1]
        %v803 = vstv %s801
        %v804 = vmul.f32 %v803, %v802
        %v805 = vadd.f32 %v800, %v804
        %s806 = sld [smem:[#allocation5 + $0x402]]
        %v807 = vld [vmem:[#allocation4 + $0x4] sm:$0x1]
        %v808 = vstv %s806
        %v809 = vmul.f32 %v808, %v807
        %v810 = vadd.f32 %v805, %v809
        %s811 = sld [smem:[#allocation5 + $0x482]]
        %v812 = vld [vmem:[#allocation4 + $0x5] sm:$0x1]
        %v813 = vstv %s811
        %v814 = vmul.f32 %v813, %v812
        %v815 = vadd.f32 %v810, %v814
        %s816 = sld [smem:[#allocation5 + $0x502]]
        %v817 = vld [vmem:[#allocation4 + $0x6] sm:$0x1]
        %v818 = vstv %s816
        %v819 = vmul.f32 %v818, %v817
        %v820 = vadd.f32 %v815, %v819
        %s821 = sld [smem:[#allocation5 + $0x582]]
        %v822 = vld [vmem:[#allocation4 + $0x7] sm:$0x1]
        %v823 = vstv %s821
        %v824 = vmul.f32 %v823, %v822
        %v825 = vadd.f32 %v820, %v824
        %v826 = vtanh.pop %v825
        %827 = vst [vmem:[%s150 + $0x2] sm:$0x1] %v826
        %s828 = sand.u32 %s72, 1
        %s829 = scalar_lea.sflag [#allocation6], %s828
        %s830 = sand.u32 %s72, 1
        %s831 = smul.addr %s830, 4
        %s832 = scalar_lea.vmem [#allocation8], %s831
        // Predicated region
        $region33: #{tpu_custom_call.1} parent=27 // pred_check
          %p833 = pneg %p82
        $region34: #{tpu_custom_call.1} parent=27 // pred_check_branch
          %835 = sbr.rel (%p833) target = $region36
        $region35: #{tpu_custom_call.1} parent=27 // pred_region
          %s837 = ssub.s32 64, 64
          %838 = vsyncadd %s829, %s837
          %s839 = smul.addr %s17, 64
          %s840 = scalar_lea.hbm %s2, %s839
          %s842 = sshll.u32 %s832, 4
          %s843 = int_to_ptr.vmem [resolvable:$true] %s842
          %845 = dma.vmem_to_hbm [thread:$0]  %s843, 64, %s840, %s829
        $region36: #{tpu_custom_call.1} parent=27 // pred_fallthru
          _
      $region28: #{tpu_custom_call.1} parent=5 // pred_fallthru
        _
      %p846 = scmp.le.s32.totalorder 2, %s12
      // Predicated region
      $region37: #{tpu_custom_call.1} parent=5 // pred_check
        %p847 = pneg %p846
      $region38: #{tpu_custom_call.1} parent=5 // pred_check_branch
        %849 = sbr.rel (%p847) target = $region40
      $region39: #{tpu_custom_call.1} parent=5 // pred_region
        %s850 = ssub.s32 %s12, 2
        // Predicated region
        $region41: #{tpu_custom_call.1} parent=39 // pred_check
          %p851 = pneg %p88
        $region42: #{tpu_custom_call.1} parent=39 // pred_check_branch
          %853 = sbr.rel (%p851) target = $region44
        $region43: #{tpu_custom_call.1} parent=39 // pred_region
          %s854 = sand.u32 %s73, 1
          %s855 = scalar_lea.sflag [#allocation6], %s854
          %s856 = sand.u32 %s73, 1
          %s857 = smul.addr %s856, 4
          %s858 = scalar_lea.vmem [#allocation8], %s857
          %859 = dma.done %s855, 64
        $region44: #{tpu_custom_call.1} parent=39 // pred_fallthru
          _
      $region40: #{tpu_custom_call.1} parent=5 // pred_fallthru
        _
    $region6: #{tpu_custom_call.1} parent=1 // loop_footer
      %s16 = sadd.s32 1, %s12
    $region7: #{tpu_custom_call.1} parent=1 // loop_footer_branch
      %11 = sbr.rel target = $region3
    $region8: #{tpu_custom_call.1} parent=1 // loop_exit
      _
    %860 = vsyncpa [#allocation6], 1
    %s861 = scalar_lea.sflag [#allocation6], 1
    %862 = vsyncpa %s861, 1
    %863 = vsyncpa [#allocation7], 1
    %s864 = scalar_lea.sflag [#allocation7], 1
    %865 = vsyncpa %s864, 1

</llo_original>
